<compile_context>
chip_gen: v7x
topology: tpu7x:2x2x1
jax: 0.10.0
libtpu: 0.0.40
codegen_flags: <defaults>
</compile_context>

<pallas_src>
import jax
import jax.numpy as jnp
from jax.experimental import pallas as pl
from jax.experimental.pallas import tpu as pltpu

_MIB = 1024 * 1024


def _round_up(x, m):
    return ((x + m - 1) // m) * m


def _tpu_vmem_capacity():
    """Per-core VMEM bytes; conservative 64 MiB fallback if the query fails."""
    try:
        cap = int(pltpu.get_tpu_info().vmem_capacity_bytes)
        if cap > 0:
            return cap
    except Exception:
        pass
    return 64 * _MIB


def _vmem_limit(capacity):
    # Leave headroom for compiler-internal scratch; never ask for more than 100 MiB.
    return int(min(capacity * 0.85, 100 * _MIB))


def _pick_hidden_tile(hidden, target, quantum=128):
    """Largest multiple of `quantum` that divides `hidden` and is <= target."""
    if hidden % quantum != 0:
        return hidden                      # fall back to full-hidden block
    t = (min(target, hidden) // quantum) * quantum
    while t >= quantum:
        if hidden % t == 0:
            return t
        t -= quantum
    return hidden


def prepare_ffn_weights(w1, w2, w3, *, compute_dtype=jnp.bfloat16, vmem_budget=None):
    """One-time weight prep (call at init, NOT in the per-token hot path).

    w1, w3: (hidden, dim)   w2: (dim, hidden)   -- PyTorch nn.Linear layout.

    Returns (w13, w2t, th):
      w13: (dim, 2*hidden) in compute_dtype, hidden split into th-sized blocks,
           each block laid out as [w1 block | w3 block] so the kernel reads one
           contiguous lane-aligned (D, 2*th) tile per hidden step.
      w2t: (hidden, dim) in compute_dtype.
      th : chosen hidden tile. th == hidden selects the weights-resident path
           (constant block indices -> fetched into VMEM exactly once).
    """
    hidden, dim = w1.shape
    if vmem_budget is None:
        vmem_budget = _vmem_limit(_tpu_vmem_capacity())
    wb = jnp.dtype(compute_dtype).itemsize
    total_weight_bytes = 3 * dim * hidden * wb
    if 2 * total_weight_bytes <= vmem_budget // 3:
        # Small model: keep the full fused weights resident in VMEM.
        th = hidden
    else:
        # Large model: tile hidden. Smaller th on VMEM-tight chips / huge D.
        target = 256 if (vmem_budget < 80 * _MIB or dim >= 8192) else 512
        th = _pick_hidden_tile(hidden, target)
    nh = hidden // th
    w1t = w1.T.astype(compute_dtype).reshape(dim, nh, th)
    w3t = w3.T.astype(compute_dtype).reshape(dim, nh, th)
    w13 = jnp.concatenate([w1t, w3t], axis=2).reshape(dim, 2 * hidden)
    w2t = w2.T.astype(compute_dtype)                 # (hidden, dim)
    return w13, w2t, th


def _ffn_kernel(x_ref, w13_ref, w2t_ref, o_ref, acc_ref):
    # x_ref: (tm, D)  w13_ref: (D, 2*th)  w2t_ref: (th, D)
    # o_ref: (tm, D)  acc_ref: (tm, D) f32 scratch, resident across the hidden axis.
    th = w2t_ref.shape[0]
    h = pl.program_id(1)

    @pl.when(h == 0)
    def _init():
        acc_ref[...] = jnp.zeros_like(acc_ref)

    x = x_ref[...]
    # Fused gate/up projection: one MXU matmul -> (tm, 2*th), then static
    # lane-aligned slices for the two halves. f32 accumulation on the MXU.
    z2 = jnp.dot(x, w13_ref[...], preferred_element_type=jnp.float32)
    z = z2[:, :th] * z2[:, th:]
    g = z * jax.nn.sigmoid(z)            # SiLU applied to the product (as in model.py)
    acc_ref[...] += jnp.dot(g.astype(w2t_ref.dtype), w2t_ref[...],
                            preferred_element_type=jnp.float32)

    @pl.when(h == pl.num_programs(1) - 1)
    def _writeback():
        o_ref[...] = acc_ref[...].astype(o_ref.dtype)


def _pick_tm(M, D, th, vmem_limit, x_bytes, w_bytes, o_bytes):
    """Largest token tile (multiple of 256) whose VMEM footprint fits."""
    budget = int(vmem_limit * 0.9)
    cap = 1024 if vmem_limit >= 96 * _MIB else 512     # 128 MiB chips vs v7x
    tm = max(256, min(cap, _round_up(M, 256)))

    def fits(t):
        x_buf = 2 * t * D * x_bytes                # double-buffered x tile
        o_buf = 2 * t * D * o_bytes                # double-buffered out tile
        w_buf = 2 * 3 * D * th * w_bytes           # double-buffered w13 + w2t tiles
        acc = t * D * 4                            # f32 accumulator scratch
        slab = 2 * t * 2 * th * 4                  # z2 / gated f32 intermediates
        return x_buf + o_buf + w_buf + acc + slab <= budget

    while tm > 256 and not fits(tm):
        tm -= 256
    if tm == 256 and not fits(256):
        tm = 128
    # Keep both TensorCores busy (v7x megacore) when there is only one token tile.
    if tm >= 512 and _round_up(M, tm) == tm:
        tm //= 2
    return tm


def feed_forward(x, w13, w2t, th, *, tm=None, vmem_limit_bytes=None):
    """x: (M, dim).  w13: (dim, 2*hidden), w2t: (hidden, dim) from prepare_ffn_weights."""
    M, D = x.shape
    H = w2t.shape[0]
    assert w13.shape == (D, 2 * H)
    assert H % th == 0

    if vmem_limit_bytes is None:
        vmem_limit_bytes = _vmem_limit(_tpu_vmem_capacity())

    out_dtype = x.dtype
    xc = x.astype(w13.dtype)                         # bf16 hot path
    x_bytes = jnp.dtype(xc.dtype).itemsize
    w_bytes = jnp.dtype(w13.dtype).itemsize
    o_bytes = jnp.dtype(out_dtype).itemsize

    if tm is None:
        tm = _pick_tm(M, D, th, vmem_limit_bytes, x_bytes, w_bytes, o_bytes)

    m_pad = _round_up(M, tm)
    if m_pad != M:
        xc = jnp.pad(xc, ((0, m_pad - M), (0, 0)))   # padded rows sliced off below

    grid = (m_pad // tm, H // th)

    # Weights are streamed once per token tile, or exactly once when resident (th == H).
    weight_passes = 1 if th == H else grid[0]
    cost = pl.CostEstimate(
        flops=6 * m_pad * D * H,                      # 2*M*D*(2H) + 2*M*H*D
        transcendentals=m_pad * H,                    # sigmoid
        bytes_accessed=(m_pad * D * x_bytes
                        + m_pad * D * o_bytes
                        + weight_passes * (w13.size + w2t.size) * w_bytes),
    )

    out = pl.pallas_call(
        _ffn_kernel,
        out_shape=jax.ShapeDtypeStruct((m_pad, D), out_dtype),
        grid_spec=pltpu.PrefetchScalarGridSpec(
            num_scalar_prefetch=0,
            grid=grid,
            in_specs=[
                pl.BlockSpec((tm, D), lambda i, h: (i, 0)),        # x tile
                pl.BlockSpec((D, 2 * th), lambda i, h: (0, h)),    # fused w1|w3 tile
                pl.BlockSpec((th, D), lambda i, h: (h, 0)),        # w2 tile
            ],
            out_specs=pl.BlockSpec((tm, D), lambda i, h: (i, 0)),
            scratch_shapes=[pltpu.VMEM((tm, D), jnp.float32)],
        ),
        compiler_params=pltpu.CompilerParams(
            dimension_semantics=("parallel", "arbitrary"),
            vmem_limit_bytes=int(vmem_limit_bytes),
        ),
        cost_estimate=cost,
    )(xc, w13, w2t)

    return out[:M] if m_pad != M else out


def _reference_matched(x, w1, w2, w3, dtype):
    """Reference in the same mixed precision as the kernel (dtype operands, f32 acc)."""
    xb = x.astype(dtype)
    z = (jnp.dot(xb, w1.T.astype(dtype), preferred_element_type=jnp.float32)
         * jnp.dot(xb, w3.T.astype(dtype), preferred_element_type=jnp.float32))
    g = z * jax.nn.sigmoid(z)
    return jnp.dot(g.astype(dtype), w2.T.astype(dtype),
                   preferred_element_type=jnp.float32).astype(x.dtype)


if __name__ == "__main__":
    # Small config consistent with the module's hidden-dim derivation:
    # dim=128, multiple_of=64 -> hidden = 64 * ceil(int(2*4*128/3)/64) = 384
    dim = 128
    multiple_of = 64
    hidden = 4 * dim
    hidden = int(2 * hidden / 3)
    hidden = multiple_of * ((hidden + multiple_of - 1) // multiple_of)  # 384

    batch, seq = 2, 8
    key = jax.random.PRNGKey(0)
    kx, k1, k2, k3 = jax.random.split(key, 4)

    x = jax.random.normal(kx, (batch, seq, dim), dtype=jnp.float32)
    # Deterministic params in PyTorch nn.Linear layout: weight shape (out, in).
    w1 = jax.random.normal(k1, (hidden, dim), dtype=jnp.float32) * (dim ** -0.5)
    w2 = jax.random.normal(k2, (dim, hidden), dtype=jnp.float32) * (hidden ** -0.5)
    w3 = jax.random.normal(k3, (hidden, dim), dtype=jnp.float32) * (dim ** -0.5)

    # One-time weight prep (init-time): bf16 fused weights, generation-aware th.
    w13, w2t, th = prepare_ffn_weights(w1, w2, w3)

    x2d = x.reshape(batch * seq, dim)
    out = feed_forward(x2d, w13, w2t, th)
    out = jax.block_until_ready(out).reshape(batch, seq, dim)

    # Compare against a reference computed in the same (bf16 operand / f32 acc)
    # precision as the kernel; bf16 rounding vs the pure-f32 module is expected
    # ~1e-2-level relative and is a precision choice, not a bug.
    ref = _reference_matched(x2d, w1, w2, w3, w13.dtype).reshape(batch, seq, dim)
    assert jnp.allclose(out, ref, atol=2e-2, rtol=2e-2), "mismatch vs reference"

    print("KERNEL_OK")
</pallas_src>

<mosaic_0001>
module attributes {stable_mosaic.version = 11 : i64} {
  func.func @_ffn_kernel(%arg0: i32, %arg1: i32, %arg2: memref<256x128xbf16, #tpu.memory_space<vmem>>, %arg3: memref<128x768xbf16, #tpu.memory_space<vmem>>, %arg4: memref<384x128xbf16, #tpu.memory_space<vmem>>, %arg5: memref<256x128xf32, #tpu.memory_space<vmem>>, %arg6: memref<256x128xf32, #tpu.memory_space<vmem>>) attributes {dimension_semantics = [#tpu.dimension_semantics<parallel>, #tpu.dimension_semantics<arbitrary>], iteration_bounds = array<i64: 1, 1>, scalar_prefetch = 0 : i64, scratch_operands = 1 : i64, tpu.core_type = #tpu.core_type<tc>, window_params = [{transform_indices = @transform_0, window_bounds = array<i64: 256, 128>}, {transform_indices = @transform_1, window_bounds = array<i64: 128, 768>}, {transform_indices = @transform_2, window_bounds = array<i64: 384, 128>}, {transform_indices = @transform_3, window_bounds = array<i64: 256, 128>}]} {
    %c0_i32 = arith.constant 0 : i32
    %0 = arith.cmpi eq, %arg1, %c0_i32 : i32
    %1 = arith.extui %0 : i1 to i32
    %c0_i32_0 = arith.constant 0 : i32
    %2 = arith.cmpi ne, %1, %c0_i32_0 : i32
    scf.if %2 {
      %cst_14 = arith.constant 0.000000e+00 : f32
      %24 = vector.broadcast %cst_14 : f32 to vector<256x128xf32>
      %c0_15 = arith.constant 0 : index
      %c0_16 = arith.constant 0 : index
      %25 = vector.load %arg6[%c0_15, %c0_16] : memref<256x128xf32, #tpu.memory_space<vmem>>, vector<256x128xf32>
      tpu.vector_store %arg6[%c0_15, %c0_16], %24 {strides = array<i32>} : memref<256x128xf32, #tpu.memory_space<vmem>>, vector<256x128xf32>,
    } else {
    }
    %c0 = arith.constant 0 : index
    %c0_1 = arith.constant 0 : index
    %3 = vector.load %arg2[%c0, %c0_1] : memref<256x128xbf16, #tpu.memory_space<vmem>>, vector<256x128xbf16>
    %c0_2 = arith.constant 0 : index
    %c0_3 = arith.constant 0 : index
    %4 = vector.load %arg3[%c0_2, %c0_3] : memref<128x768xbf16, #tpu.memory_space<vmem>>, vector<128x768xbf16>
    %cst = arith.constant dense<0.000000e+00> : vector<256x768xf32>
    %5 = tpu.matmul %3, %4, %cst {dimension_numbers = #tpu.dot_dimension_numbers<[1], [0], [0], [1], [0, 0, 1, 1], [], []>} : vector<256x128xbf16>, vector<128x768xbf16>, vector<256x768xf32> -> vector<256x768xf32>
    %6 = vector.extract_strided_slice %5 {offsets = [0, 0], sizes = [256, 384], strides = [1, 1]} : vector<256x768xf32> to vector<256x384xf32>
    %7 = vector.extract_strided_slice %5 {offsets = [0, 384], sizes = [256, 384], strides = [1, 1]} : vector<256x768xf32> to vector<256x384xf32>
    %8 = arith.mulf %6, %7 : vector<256x384xf32>
    %9 = arith.negf %8 : vector<256x384xf32>
    %10 = math.exp %9 : vector<256x384xf32>
    %cst_4 = arith.constant 1.000000e+00 : f32
    %11 = vector.broadcast %cst_4 : f32 to vector<256x384xf32>
    %12 = arith.addf %11, %10 : vector<256x384xf32>
    %13 = arith.divf %11, %12 : vector<256x384xf32>
    %14 = arith.mulf %8, %13 : vector<256x384xf32>
    %c0_5 = arith.constant 0 : index
    %c0_6 = arith.constant 0 : index
    %15 = vector.load %arg6[%c0_5, %c0_6] : memref<256x128xf32, #tpu.memory_space<vmem>>, vector<256x128xf32>
    %16 = arith.truncf %14 : vector<256x384xf32> to vector<256x384xbf16>
    %c0_7 = arith.constant 0 : index
    %c0_8 = arith.constant 0 : index
    %17 = vector.load %arg4[%c0_7, %c0_8] : memref<384x128xbf16, #tpu.memory_space<vmem>>, vector<384x128xbf16>
    %cst_9 = arith.constant dense<0.000000e+00> : vector<256x128xf32>
    %18 = tpu.matmul %16, %17, %cst_9 {dimension_numbers = #tpu.dot_dimension_numbers<[1], [0], [0], [1], [0, 0, 1, 1], [], []>} : vector<256x384xbf16>, vector<384x128xbf16>, vector<256x128xf32> -> vector<256x128xf32>
    %19 = arith.addf %15, %18 : vector<256x128xf32>
    %c0_10 = arith.constant 0 : index
    %c0_11 = arith.constant 0 : index
    %20 = vector.load %arg6[%c0_10, %c0_11] : memref<256x128xf32, #tpu.memory_space<vmem>>, vector<256x128xf32>
    tpu.vector_store %arg6[%c0_10, %c0_11], %19 {strides = array<i32>} : memref<256x128xf32, #tpu.memory_space<vmem>>, vector<256x128xf32>,
    %c0_i32_12 = arith.constant 0 : i32
    %21 = arith.cmpi eq, %arg1, %c0_i32_12 : i32
    %22 = arith.extui %21 : i1 to i32
    %c0_i32_13 = arith.constant 0 : i32
    %23 = arith.cmpi ne, %22, %c0_i32_13 : i32
    scf.if %23 {
      %c0_14 = arith.constant 0 : index
      %c0_15 = arith.constant 0 : index
      %24 = vector.load %arg6[%c0_14, %c0_15] : memref<256x128xf32, #tpu.memory_space<vmem>>, vector<256x128xf32>
      %c0_16 = arith.constant 0 : index
      %c0_17 = arith.constant 0 : index
      %25 = vector.load %arg5[%c0_16, %c0_17] : memref<256x128xf32, #tpu.memory_space<vmem>>, vector<256x128xf32>
      tpu.vector_store %arg5[%c0_16, %c0_17], %24 {strides = array<i32>} : memref<256x128xf32, #tpu.memory_space<vmem>>, vector<256x128xf32>,
    } else {
    }
    return
  }
  func.func @transform_0(%arg0: i32, %arg1: i32) -> (i32, i32) {
    %c0_i32 = arith.constant 0 : i32
    %c0_i32_0 = arith.constant 0 : i32
    return %arg0, %c0_i32 : i32, i32
  }
  func.func @transform_1(%arg0: i32, %arg1: i32) -> (i32, i32) {
    %c0_i32 = arith.constant 0 : i32
    %c0_i32_0 = arith.constant 0 : i32
    return %c0_i32, %arg1 : i32, i32
  }
  func.func @transform_2(%arg0: i32, %arg1: i32) -> (i32, i32) {
    %c0_i32 = arith.constant 0 : i32
    %c0_i32_0 = arith.constant 0 : i32
    return %arg1, %c0_i32 : i32, i32
  }
  func.func @transform_3(%arg0: i32, %arg1: i32) -> (i32, i32) {
    %c0_i32 = arith.constant 0 : i32
    %c0_i32_0 = arith.constant 0 : i32
    return %arg0, %c0_i32 : i32, i32
  }
}

</mosaic_0001>

<llo_original>
// kernel: tpu_custom_call.1
$region0: #{tpu_custom_call.1}
  #allocation0 [shape = 'u32[]', space=smem, size = 0x4, offset = 0x4, fixed_abs, tag = 'smem constant byte address 0x4 - core index']
  #allocation1 [shape = 'u32[144,128]{1,0:T(1,128)}', space=vmem, size = 0x12000, scoped, tag = 'internal scratch']
  #allocation2 [shape = 'f32[256,128]{1,0:T(8,128)}', space=vmem, size = 0x20000, scoped, tag = 'scratch operand']
  %s0 = inlined_call_operand.hbm [shape: bf16[256,128], index: 0, kind: input, shape index: {}]
  %s1 = inlined_call_operand.hbm [shape: bf16[128,768], index: 1, kind: input, shape index: {}]
  %s2 = inlined_call_operand.hbm [shape: bf16[384,128], index: 2, kind: input, shape index: {}]
  %s3 = inlined_call_operand.hbm [shape: f32[256,128], index: 3, kind: output, shape index: {}]
  %s4 = sld [smem:[#allocation0]]
  $region42: #{tpu_custom_call.1} parent=0
    _
  %s6 = ssub.s32 1, %s4
  %s7 = scalar_select 0, %s6, %s4
  $region1: #{tpu_custom_call.1} parent=0
    #allocation3 [shape = 'u8[65536]{0}', space=vmem, size = 0x10000, scoped, tag = 'input window, operand 0, single buffered']
    #allocation4 [shape = 's32[1]{0}', space=sflag, size = 0x4, scoped, tag = 'scoped memory for tpu_custom_call.1']
    #allocation5 [shape = 's32[1]{0}', space=sflag, size = 0x4, scoped, tag = 'scoped memory for tpu_custom_call.1']
    #allocation6 [shape = 'u8[196608]{0}', space=vmem, size = 0x30000, scoped, tag = 'input window, operand 1, single buffered']
    #allocation7 [shape = 's32[1]{0}', space=sflag, size = 0x4, scoped, tag = 'scoped memory for tpu_custom_call.1']
    #allocation8 [shape = 'u8[98304]{0}', space=vmem, size = 0x18000, scoped, tag = 'input window, operand 2, single buffered']
    #allocation9 [shape = 'u8[131072]{0}', space=vmem, size = 0x20000, scoped, tag = 'output window, operand 0, single buffered']
    %8 = vsyncpa [#allocation4], 0
    %9 = vsyncpa [#allocation7], 0
    %10 = vsyncpa [#allocation5], 0
    // Predicated region
    $region2: #{tpu_custom_call.1} parent=1 // pred_check
      _
    $region3: #{tpu_custom_call.1} parent=1 // pred_check_branch
      %12 = sbr.rel (0) target = $region5
    $region4: #{tpu_custom_call.1} parent=1 // pred_region
      %s14 = ssub.s32 2048, 2048
      %15 = vsyncadd [#allocation4], %s14
      %s16 = sshll.u32 [#allocation3], 4
      %s17 = int_to_ptr.vmem [resolvable:$true] %s16
      %22 = dma.hbm_to_vmem [thread:$0]  %s0, 2048, %s17, [#allocation4], 64, 64, 4
    $region5: #{tpu_custom_call.1} parent=1 // pred_fallthru
      _
    // Predicated region
    $region6: #{tpu_custom_call.1} parent=1 // pred_check
      _
    $region7: #{tpu_custom_call.1} parent=1 // pred_check_branch
      %24 = sbr.rel (0) target = $region9
    $region8: #{tpu_custom_call.1} parent=1 // pred_region
      %s26 = ssub.s32 6144, 6144
      %27 = vsyncadd [#allocation7], %s26
      %s28 = sshll.u32 [#allocation6], 4
      %s29 = int_to_ptr.vmem [resolvable:$true] %s28
      %34 = dma.hbm_to_vmem [thread:$0]  %s1, 6144, %s29, [#allocation7], 384, 384, 24
    $region9: #{tpu_custom_call.1} parent=1 // pred_fallthru
      _
    // Predicated region
    $region10: #{tpu_custom_call.1} parent=1 // pred_check
      _
    $region11: #{tpu_custom_call.1} parent=1 // pred_check_branch
      %36 = sbr.rel (0) target = $region13
    $region12: #{tpu_custom_call.1} parent=1 // pred_region
      %s38 = ssub.s32 3072, 3072
      %39 = vsyncadd [#allocation7], %s38
      %s40 = sshll.u32 [#allocation8], 4
      %s41 = int_to_ptr.vmem [resolvable:$true] %s40
      %46 = dma.hbm_to_vmem [thread:$0]  %s2, 3072, %s41, [#allocation7], 64, 64, 4
    $region13: #{tpu_custom_call.1} parent=1 // pred_fallthru
      _
    // Predicated region
    $region14: #{tpu_custom_call.1} parent=1 // pred_check
      _
    $region15: #{tpu_custom_call.1} parent=1 // pred_check_branch
      %48 = sbr.rel (0) target = $region17
    $region16: #{tpu_custom_call.1} parent=1 // pred_region
      %49 = dma.done [#allocation4], 2048
    $region17: #{tpu_custom_call.1} parent=1 // pred_fallthru
      _
    // Predicated region
    $region18: #{tpu_custom_call.1} parent=1 // pred_check
      _
    $region19: #{tpu_custom_call.1} parent=1 // pred_check_branch
      %51 = sbr.rel (0) target = $region21
    $region20: #{tpu_custom_call.1} parent=1 // pred_region
      %52 = dma.done [#allocation7], 6144
    $region21: #{tpu_custom_call.1} parent=1 // pred_fallthru
      _
    // Predicated region
    $region22: #{tpu_custom_call.1} parent=1 // pred_check
      _
    $region23: #{tpu_custom_call.1} parent=1 // pred_check_branch
      %54 = sbr.rel (0) target = $region25
    $region24: #{tpu_custom_call.1} parent=1 // pred_region
      %55 = dma.done [#allocation7], 3072
    $region25: #{tpu_custom_call.1} parent=1 // pred_fallthru
      _
    %p57 = scmp.eq.s32.totalorder 0, 0
    // Predicated region
    $region26: #{tpu_custom_call.1} parent=1 // pred_check
      %p58 = pneg %p57
    $region27: #{tpu_custom_call.1} parent=1 // pred_check_branch
      %60 = sbr.rel (%p58) target = $region29
    $region28: #{tpu_custom_call.1} parent=1 // pred_region
      %61 = vst [vmem:[#allocation2] sm:$0xff] 0.0
      %62 = vst [vmem:[#allocation2 + $0x8] sm:$0xff] 0.0
      %63 = vst [vmem:[#allocation2 + $0x10] sm:$0xff] 0.0
      %64 = vst [vmem:[#allocation2 + $0x18] sm:$0xff] 0.0
      %65 = vst [vmem:[#allocation2 + $0x20] sm:$0xff] 0.0
      %66 = vst [vmem:[#allocation2 + $0x28] sm:$0xff] 0.0
      %67 = vst [vmem:[#allocation2 + $0x30] sm:$0xff] 0.0
      %68 = vst [vmem:[#allocation2 + $0x38] sm:$0xff] 0.0
      %69 = vst [vmem:[#allocation2 + $0x40] sm:$0xff] 0.0
      %70 = vst [vmem:[#allocation2 + $0x48] sm:$0xff] 0.0
      %71 = vst [vmem:[#allocation2 + $0x50] sm:$0xff] 0.0
      %72 = vst [vmem:[#allocation2 + $0x58] sm:$0xff] 0.0
      %73 = vst [vmem:[#allocation2 + $0x60] sm:$0xff] 0.0
      %74 = vst [vmem:[#allocation2 + $0x68] sm:$0xff] 0.0
      %75 = vst [vmem:[#allocation2 + $0x70] sm:$0xff] 0.0
      %76 = vst [vmem:[#allocation2 + $0x78] sm:$0xff] 0.0
      %77 = vst [vmem:[#allocation2 + $0x80] sm:$0xff] 0.0
      %78 = vst [vmem:[#allocation2 + $0x88] sm:$0xff] 0.0
      %79 = vst [vmem:[#allocation2 + $0x90] sm:$0xff] 0.0
      %80 = vst [vmem:[#allocation2 + $0x98] sm:$0xff] 0.0
      %81 = vst [vmem:[#allocation2 + $0xa0] sm:$0xff] 0.0
      %82 = vst [vmem:[#allocation2 + $0xa8] sm:$0xff] 0.0
      %83 = vst [vmem:[#allocation2 + $0xb0] sm:$0xff] 0.0
      %84 = vst [vmem:[#allocation2 + $0xb8] sm:$0xff] 0.0
      %85 = vst [vmem:[#allocation2 + $0xc0] sm:$0xff] 0.0
      %86 = vst [vmem:[#allocation2 + $0xc8] sm:$0xff] 0.0
      %87 = vst [vmem:[#allocation2 + $0xd0] sm:$0xff] 0.0
      %88 = vst [vmem:[#allocation2 + $0xd8] sm:$0xff] 0.0
      %89 = vst [vmem:[#allocation2 + $0xe0] sm:$0xff] 0.0
      %90 = vst [vmem:[#allocation2 + $0xe8] sm:$0xff] 0.0
      %91 = vst [vmem:[#allocation2 + $0xf0] sm:$0xff] 0.0
      %92 = vst [vmem:[#allocation2 + $0xf8] sm:$0xff] 0.0
    $region29: #{tpu_custom_call.1} parent=1 // pred_fallthru
      _
    %v93 = vld [vmem:[#allocation3] sm:$0xf]
    %v94 = vld [vmem:[#allocation3 + $0x4] sm:$0xf]
    %v95 = vld [vmem:[#allocation3 + $0x8] sm:$0xf]
    %v96 = vld [vmem:[#allocation3 + $0xc] sm:$0xf]
    %v97 = vld [vmem:[#allocation3 + $0x10] sm:$0xf]
    %v98 = vld [vmem:[#allocation3 + $0x14] sm:$0xf]
    %v99 = vld [vmem:[#allocation3 + $0x18] sm:$0xf]
    %v100 = vld [vmem:[#allocation3 + $0x1c] sm:$0xf]
    %v101 = vld [vmem:[#allocation3 + $0x20] sm:$0xf]
    %v102 = vld [vmem:[#allocation3 + $0x24] sm:$0xf]
    %v103 = vld [vmem:[#allocation3 + $0x28] sm:$0xf]
    %v104 = vld [vmem:[#allocation3 + $0x2c] sm:$0xf]
    %v105 = vld [vmem:[#allocation3 + $0x30] sm:$0xf]
    %v106 = vld [vmem:[#allocation3 + $0x34] sm:$0xf]
    %v107 = vld [vmem:[#allocation3 + $0x38] sm:$0xf]
    %v108 = vld [vmem:[#allocation3 + $0x3c] sm:$0xf]
    %v109 = vld [vmem:[#allocation3 + $0x40] sm:$0xf]
    %v110 = vld [vmem:[#allocation3 + $0x44] sm:$0xf]
    %v111 = vld [vmem:[#allocation3 + $0x48] sm:$0xf]
    %v112 = vld [vmem:[#allocation3 + $0x4c] sm:$0xf]
    %v113 = vld [vmem:[#allocation3 + $0x50] sm:$0xf]
    %v114 = vld [vmem:[#allocation3 + $0x54] sm:$0xf]
    %v115 = vld [vmem:[#allocation3 + $0x58] sm:$0xf]
    %v116 = vld [vmem:[#allocation3 + $0x5c] sm:$0xf]
    %v117 = vld [vmem:[#allocation3 + $0x60] sm:$0xf]
    %v118 = vld [vmem:[#allocation3 + $0x64] sm:$0xf]
    %v119 = vld [vmem:[#allocation3 + $0x68] sm:$0xf]
    %v120 = vld [vmem:[#allocation3 + $0x6c] sm:$0xf]
    %v121 = vld [vmem:[#allocation3 + $0x70] sm:$0xf]
    %v122 = vld [vmem:[#allocation3 + $0x74] sm:$0xf]
    %v123 = vld [vmem:[#allocation3 + $0x78] sm:$0xf]
    %v124 = vld [vmem:[#allocation3 + $0x7c] sm:$0xf]
    %v125 = vld [vmem:[#allocation6] sm:$0xff]
    %v126 = vld [vmem:[#allocation6 + $0x8] sm:$0xff]
    %v127 = vld [vmem:[#allocation6 + $0x10] sm:$0xff]
    %v128 = vld [vmem:[#allocation6 + $0x18] sm:$0xff]
    %v129 = vld [vmem:[#allocation6 + $0x20] sm:$0xff]
    %v130 = vld [vmem:[#allocation6 + $0x28] sm:$0xff]
    %v131 = vld [vmem:[#allocation6 + $0x30] sm:$0xff]
    %v132 = vld [vmem:[#allocation6 + $0x38] sm:$0xff]
    %v133 = vld [vmem:[#allocation6 + $0x40] sm:$0xff]
    %v134 = vld [vmem:[#allocation6 + $0x48] sm:$0xff]
    %v135 = vld [vmem:[#allocation6 + $0x50] sm:$0xff]
    %v136 = vld [vmem:[#allocation6 + $0x58] sm:$0xff]
    %v137 = vld [vmem:[#allocation6 + $0x60] sm:$0xff]
    %v138 = vld [vmem:[#allocation6 + $0x68] sm:$0xff]
    %v139 = vld [vmem:[#allocation6 + $0x70] sm:$0xff]
    %v140 = vld [vmem:[#allocation6 + $0x78] sm:$0xff]
    %v141 = vld [vmem:[#allocation6 + $0x80] sm:$0xff]
    %v142 = vld [vmem:[#allocation6 + $0x88] sm:$0xff]
    %v143 = vld [vmem:[#allocation6 + $0x90] sm:$0xff]
    %v144 = vld [vmem:[#allocation6 + $0x98] sm:$0xff]
    %v145 = vld [vmem:[#allocation6 + $0xa0] sm:$0xff]
    %v146 = vld [vmem:[#allocation6 + $0xa8] sm:$0xff]
    %v147 = vld [vmem:[#allocation6 + $0xb0] sm:$0xff]
    %v148 = vld [vmem:[#allocation6 + $0xb8] sm:$0xff]
    %v149 = vld [vmem:[#allocation6 + $0xc0] sm:$0xff]
    %v150 = vld [vmem:[#allocation6 + $0xc8] sm:$0xff]
    %v151 = vld [vmem:[#allocation6 + $0xd0] sm:$0xff]
    %v152 = vld [vmem:[#allocation6 + $0xd8] sm:$0xff]
    %v153 = vld [vmem:[#allocation6 + $0xe0] sm:$0xff]
    %v154 = vld [vmem:[#allocation6 + $0xe8] sm:$0xff]
    %v155 = vld [vmem:[#allocation6 + $0xf0] sm:$0xff]
    %v156 = vld [vmem:[#allocation6 + $0xf8] sm:$0xff]
    %v157 = vld [vmem:[#allocation6 + $0x100] sm:$0xff]
    %v158 = vld [vmem:[#allocation6 + $0x108] sm:$0xff]
    %v159 = vld [vmem:[#allocation6 + $0x110] sm:$0xff]
    %v160 = vld [vmem:[#allocation6 + $0x118] sm:$0xff]
    %v161 = vld [vmem:[#allocation6 + $0x120] sm:$0xff]
    %v162 = vld [vmem:[#allocation6 + $0x128] sm:$0xff]
    %v163 = vld [vmem:[#allocation6 + $0x130] sm:$0xff]
    %v164 = vld [vmem:[#allocation6 + $0x138] sm:$0xff]
    %v165 = vld [vmem:[#allocation6 + $0x140] sm:$0xff]
    %v166 = vld [vmem:[#allocation6 + $0x148] sm:$0xff]
    %v167 = vld [vmem:[#allocation6 + $0x150] sm:$0xff]
    %v168 = vld [vmem:[#allocation6 + $0x158] sm:$0xff]
    %v169 = vld [vmem:[#allocation6 + $0x160] sm:$0xff]
    %v170 = vld [vmem:[#allocation6 + $0x168] sm:$0xff]
    %v171 = vld [vmem:[#allocation6 + $0x170] sm:$0xff]
    %v172 = vld [vmem:[#allocation6 + $0x178] sm:$0xff]
    %v205 = vunpack.c.l.b16 %v93
    %v206 = vunpack.c.l.b16 %v94
    %v207 = vunpack.c.l.b16 %v95
    %v208 = vunpack.c.l.b16 %v96
    %v209 = vunpack.c.l.b16 %v97
    %v210 = vunpack.c.l.b16 %v98
    %v211 = vunpack.c.l.b16 %v99
    %v212 = vunpack.c.l.b16 %v100
    %v213 = vunpack.c.l.b16 %v101
    %v214 = vunpack.c.l.b16 %v102
    %v215 = vunpack.c.l.b16 %v103
    %v216 = vunpack.c.l.b16 %v104
    %v217 = vunpack.c.l.b16 %v105
    %v218 = vunpack.c.l.b16 %v106
    %v219 = vunpack.c.l.b16 %v107
    %v220 = vunpack.c.l.b16 %v108
    %v221 = vunpack.c.l.b16 %v109
    %v222 = vunpack.c.l.b16 %v110
    %v223 = vunpack.c.l.b16 %v111
    %v224 = vunpack.c.l.b16 %v112
    %v225 = vunpack.c.l.b16 %v113
    %v226 = vunpack.c.l.b16 %v114
    %v227 = vunpack.c.l.b16 %v115
    %v228 = vunpack.c.l.b16 %v116
    %v229 = vunpack.c.l.b16 %v117
    %v230 = vunpack.c.l.b16 %v118
    %v231 = vunpack.c.l.b16 %v119
    %v232 = vunpack.c.l.b16 %v120
    %v233 = vunpack.c.l.b16 %v121
    %v234 = vunpack.c.l.b16 %v122
    %v235 = vunpack.c.l.b16 %v123
    %v236 = vunpack.c.l.b16 %v124
    %v237 = vpack.c.b16 %v206, %v205
    %v238 = vpack.c.b16 %v208, %v207
    %v239 = vpack.c.b16 %v210, %v209
    %v240 = vpack.c.b16 %v212, %v211
    %v241 = vpack.c.b16 %v214, %v213
    %v242 = vpack.c.b16 %v216, %v215
    %v243 = vpack.c.b16 %v218, %v217
    %v244 = vpack.c.b16 %v220, %v219
    %v245 = vpack.c.b16 %v222, %v221
    %v246 = vpack.c.b16 %v224, %v223
    %v247 = vpack.c.b16 %v226, %v225
    %v248 = vpack.c.b16 %v228, %v227
    %v249 = vpack.c.b16 %v230, %v229
    %v250 = vpack.c.b16 %v232, %v231
    %v251 = vpack.c.b16 %v234, %v233
    %v252 = vpack.c.b16 %v236, %v235
    %v317 = vunpack.c.l.b16 %v125
    %v318 = vunpack.c.h.b16 %v125
    %v319 = vunpack.c.l.b16 %v126
    %v320 = vunpack.c.h.b16 %v126
    %v321 = vunpack.c.l.b16 %v127
    %v322 = vunpack.c.h.b16 %v127
    %v323 = vunpack.c.l.b16 %v128
    %v324 = vunpack.c.h.b16 %v128
    %v325 = vunpack.c.l.b16 %v129
    %v326 = vunpack.c.h.b16 %v129
    %v327 = vunpack.c.l.b16 %v130
    %v328 = vunpack.c.h.b16 %v130
    %v329 = vunpack.c.l.b16 %v131
    %v330 = vunpack.c.h.b16 %v131
    %v331 = vunpack.c.l.b16 %v132
    %v332 = vunpack.c.h.b16 %v132
    %v333 = vunpack.c.l.b16 %v133
    %v334 = vunpack.c.h.b16 %v133
    %v335 = vunpack.c.l.b16 %v134
    %v336 = vunpack.c.h.b16 %v134
    %v337 = vunpack.c.l.b16 %v135
    %v338 = vunpack.c.h.b16 %v135
    %v339 = vunpack.c.l.b16 %v136
    %v340 = vunpack.c.h.b16 %v136
    %v341 = vunpack.c.l.b16 %v137
    %v342 = vunpack.c.h.b16 %v137
    %v343 = vunpack.c.l.b16 %v138
    %v344 = vunpack.c.h.b16 %v138
    %v345 = vunpack.c.l.b16 %v139
    %v346 = vunpack.c.h.b16 %v139
    %v347 = vunpack.c.l.b16 %v140
    %v348 = vunpack.c.h.b16 %v140
    %v349 = vunpack.c.l.b16 %v141
    %v350 = vunpack.c.h.b16 %v141
    %v351 = vunpack.c.l.b16 %v142
    %v352 = vunpack.c.h.b16 %v142
    %v353 = vunpack.c.l.b16 %v143
    %v354 = vunpack.c.h.b16 %v143
    %v355 = vunpack.c.l.b16 %v144
    %v356 = vunpack.c.h.b16 %v144
    %v357 = vunpack.c.l.b16 %v145
    %v358 = vunpack.c.h.b16 %v145
    %v359 = vunpack.c.l.b16 %v146
    %v360 = vunpack.c.h.b16 %v146
    %v361 = vunpack.c.l.b16 %v147
    %v362 = vunpack.c.h.b16 %v147
    %v363 = vunpack.c.l.b16 %v148
    %v364 = vunpack.c.h.b16 %v148
    %v365 = vunpack.c.l.b16 %v149
    %v366 = vunpack.c.h.b16 %v149
    %v367 = vunpack.c.l.b16 %v150
    %v368 = vunpack.c.h.b16 %v150
    %v369 = vunpack.c.l.b16 %v151
    %v370 = vunpack.c.h.b16 %v151
    %v371 = vunpack.c.l.b16 %v152
    %v372 = vunpack.c.h.b16 %v152
    %v373 = vunpack.c.l.b16 %v153
    %v374 = vunpack.c.h.b16 %v153
    %v375 = vunpack.c.l.b16 %v154
    %v376 = vunpack.c.h.b16 %v154
    %v377 = vunpack.c.l.b16 %v155
    %v378 = vunpack.c.h.b16 %v155
    %v379 = vunpack.c.l.b16 %v156
    %v380 = vunpack.c.h.b16 %v156
    %v381 = vunpack.c.l.b16 %v157
    %v382 = vunpack.c.h.b16 %v157
    %v383 = vunpack.c.l.b16 %v158
    %v384 = vunpack.c.h.b16 %v158
    %v385 = vunpack.c.l.b16 %v159
    %v386 = vunpack.c.h.b16 %v159
    %v387 = vunpack.c.l.b16 %v160
    %v388 = vunpack.c.h.b16 %v160
    %v389 = vunpack.c.l.b16 %v161
    %v390 = vunpack.c.h.b16 %v161
    %v391 = vunpack.c.l.b16 %v162
    %v392 = vunpack.c.h.b16 %v162
    %v393 = vunpack.c.l.b16 %v163
    %v394 = vunpack.c.h.b16 %v163
    %v395 = vunpack.c.l.b16 %v164
    %v396 = vunpack.c.h.b16 %v164
    %v397 = vunpack.c.l.b16 %v165
    %v398 = vunpack.c.h.b16 %v165
    %v399 = vunpack.c.l.b16 %v166
    %v400 = vunpack.c.h.b16 %v166
    %v401 = vunpack.c.l.b16 %v167
    %v402 = vunpack.c.h.b16 %v167
    %v403 = vunpack.c.l.b16 %v168
    %v404 = vunpack.c.h.b16 %v168
    %v405 = vunpack.c.l.b16 %v169
    %v406 = vunpack.c.h.b16 %v169
    %v407 = vunpack.c.l.b16 %v170
    %v408 = vunpack.c.h.b16 %v170
    %v409 = vunpack.c.l.b16 %v171
    %v410 = vunpack.c.h.b16 %v171
    %v411 = vunpack.c.l.b16 %v172
    %v412 = vunpack.c.h.b16 %v172
    %v413 = vpack.c.b16 %v323, %v317
    %v414 = vpack.c.b16 %v324, %v318
    %v415 = vpack.c.b16 %v325, %v319
    %v416 = vpack.c.b16 %v326, %v320
    %v417 = vpack.c.b16 %v327, %v321
    %v418 = vpack.c.b16 %v328, %v322
    %v419 = vpack.c.b16 %v335, %v329
    %v420 = vpack.c.b16 %v336, %v330
    %v421 = vpack.c.b16 %v337, %v331
    %v422 = vpack.c.b16 %v338, %v332
    %v423 = vpack.c.b16 %v339, %v333
    %v424 = vpack.c.b16 %v340, %v334
    %v425 = vpack.c.b16 %v347, %v341
    %v426 = vpack.c.b16 %v348, %v342
    %v427 = vpack.c.b16 %v349, %v343
    %v428 = vpack.c.b16 %v350, %v344
    %v429 = vpack.c.b16 %v351, %v345
    %v430 = vpack.c.b16 %v352, %v346
    %v431 = vpack.c.b16 %v359, %v353
    %v432 = vpack.c.b16 %v360, %v354
    %v433 = vpack.c.b16 %v361, %v355
    %v434 = vpack.c.b16 %v362, %v356
    %v435 = vpack.c.b16 %v363, %v357
    %v436 = vpack.c.b16 %v364, %v358
    %v437 = vpack.c.b16 %v371, %v365
    %v438 = vpack.c.b16 %v372, %v366
    %v439 = vpack.c.b16 %v373, %v367
    %v440 = vpack.c.b16 %v374, %v368
    %v441 = vpack.c.b16 %v375, %v369
    %v442 = vpack.c.b16 %v376, %v370
    %v443 = vpack.c.b16 %v383, %v377
    %v444 = vpack.c.b16 %v384, %v378
    %v445 = vpack.c.b16 %v385, %v379
    %v446 = vpack.c.b16 %v386, %v380
    %v447 = vpack.c.b16 %v387, %v381
    %v448 = vpack.c.b16 %v388, %v382
    %v449 = vpack.c.b16 %v395, %v389
    %v450 = vpack.c.b16 %v396, %v390
    %v451 = vpack.c.b16 %v397, %v391
    %v452 = vpack.c.b16 %v398, %v392
    %v453 = vpack.c.b16 %v399, %v393
    %v454 = vpack.c.b16 %v400, %v394
    %v455 = vpack.c.b16 %v407, %v401
    %v456 = vpack.c.b16 %v408, %v402
    %v457 = vpack.c.b16 %v409, %v403
    %v458 = vpack.c.b16 %v410, %v404
    %v459 = vpack.c.b16 %v411, %v405
    %v460 = vpack.c.b16 %v412, %v406
    %509 = vmatprep.subr.bf16.mxu0 %v414
    %510 = vmatpush1.bf16.msra.mxu0 %v413
    %511 = vmatprep.subr.bf16.mxu0 %v420
    %512 = vmatpush1.bf16.msra.mxu0 %v419
    %513 = vmatprep.subr.bf16.mxu0 %v426
    %514 = vmatpush1.bf16.msra.mxu0 %v425
    %515 = vmatprep.subr.bf16.mxu0 %v432
    %516 = vmatpush1.bf16.msra.mxu0 %v431
    %517 = vmatprep.subr.bf16.mxu0 %v438
    %518 = vmatpush1.bf16.msra.mxu0 %v437
    %519 = vmatprep.subr.bf16.mxu0 %v444
    %520 = vmatpush1.bf16.msra.mxu0 %v443
    %521 = vmatprep.subr.bf16.mxu0 %v450
    %522 = vmatpush1.bf16.msra.mxu0 %v449
    %523 = vmatprep.subr.bf16.mxu0 %v456
    %524 = vmatpush1.bf16.msra.mxu0 %v455
    %525 = vmatprep.subr.bf16.mxu0 0
    %526 = vmatpush1.bf16.msra.mxu0 0
    %527 = vmatprep.subr.bf16.mxu0 0
    %528 = vmatpush1.bf16.msra.mxu0 0
    %529 = vmatprep.subr.bf16.mxu0 0
    %530 = vmatpush1.bf16.msra.mxu0 0
    %531 = vmatprep.subr.bf16.mxu0 0
    %532 = vmatpush1.bf16.msra.mxu0 0
    %533 = vmatprep.subr.bf16.mxu0 0
    %534 = vmatpush1.bf16.msra.mxu0 0
    %535 = vmatprep.subr.bf16.mxu0 0
    %536 = vmatpush1.bf16.msra.mxu0 0
    %537 = vmatprep.subr.bf16.mxu0 0
    %538 = vmatpush1.bf16.msra.mxu0 0
    %539 = vmatprep.subr.bf16.mxu0 0
    %540 = vmatpush1.bf16.msra.mxu0 0
    %541 = vmatprep.mubr.bf16.mxu0 0
    %542 = vmatmul.mubr.bf16.gmra.mrb[0].mxu0 %v237
    %v543 = vpop.f32.mrb[0].mxu0
    %v544 = vadd.f32 0.0, %v543
    %v545 = vpop.f32.mrb[0].mxu0
    %v546 = vadd.f32 0.0, %v545
    %v547 = vpop.f32.mrb[0].mxu0
    %v548 = vadd.f32 0.0, %v547
    %v549 = vpop.f32.mrb[0].mxu0
    %v550 = vadd.f32 0.0, %v549
    %551 = vmatprep.mubr.bf16.mxu0 0
    %552 = vmatmul.mubr.bf16.gmra.mrb[0].mxu0 %v238
    %v553 = vpop.f32.mrb[0].mxu0
    %v554 = vadd.f32 0.0, %v553
    %v555 = vpop.f32.mrb[0].mxu0
    %v556 = vadd.f32 0.0, %v555
    %v557 = vpop.f32.mrb[0].mxu0
    %v558 = vadd.f32 0.0, %v557
    %v559 = vpop.f32.mrb[0].mxu0
    %v560 = vadd.f32 0.0, %v559
    %561 = vmatprep.mubr.bf16.mxu0 0
    %562 = vmatmul.mubr.bf16.gmra.mrb[0].mxu0 %v239
    %v563 = vpop.f32.mrb[0].mxu0
    %v564 = vadd.f32 0.0, %v563
    %v565 = vpop.f32.mrb[0].mxu0
    %v566 = vadd.f32 0.0, %v565
    %v567 = vpop.f32.mrb[0].mxu0
    %v568 = vadd.f32 0.0, %v567
    %v569 = vpop.f32.mrb[0].mxu0
    %v570 = vadd.f32 0.0, %v569
    %571 = vmatprep.mubr.bf16.mxu0 0
    %572 = vmatmul.mubr.bf16.gmra.mrb[0].mxu0 %v240
    %v573 = vpop.f32.mrb[0].mxu0
    %v574 = vadd.f32 0.0, %v573
    %v575 = vpop.f32.mrb[0].mxu0
    %v576 = vadd.f32 0.0, %v575
    %v577 = vpop.f32.mrb[0].mxu0
    %v578 = vadd.f32 0.0, %v577
    %v579 = vpop.f32.mrb[0].mxu0
    %v580 = vadd.f32 0.0, %v579
    %581 = vmatprep.mubr.bf16.mxu0 0
    %582 = vmatmul.mubr.bf16.gmra.mrb[0].mxu0 %v241
    %v583 = vpop.f32.mrb[0].mxu0
    %v584 = vadd.f32 0.0, %v583
    %v585 = vpop.f32.mrb[0].mxu0
    %v586 = vadd.f32 0.0, %v585
    %v587 = vpop.f32.mrb[0].mxu0
    %v588 = vadd.f32 0.0, %v587
    %v589 = vpop.f32.mrb[0].mxu0
    %v590 = vadd.f32 0.0, %v589
    %591 = vmatprep.mubr.bf16.mxu0 0
    %592 = vmatmul.mubr.bf16.gmra.mrb[0].mxu0 %v242
    %v593 = vpop.f32.mrb[0].mxu0
    %v594 = vadd.f32 0.0, %v593
    %v595 = vpop.f32.mrb[0].mxu0
    %v596 = vadd.f32 0.0, %v595
    %v597 = vpop.f32.mrb[0].mxu0
    %v598 = vadd.f32 0.0, %v597
    %v599 = vpop.f32.mrb[0].mxu0
    %v600 = vadd.f32 0.0, %v599
    %601 = vmatprep.mubr.bf16.mxu0 0
    %602 = vmatmul.mubr.bf16.gmra.mrb[0].mxu0 %v243
    %v603 = vpop.f32.mrb[0].mxu0
    %v604 = vadd.f32 0.0, %v603
    %v605 = vpop.f32.mrb[0].mxu0
    %v606 = vadd.f32 0.0, %v605
    %v607 = vpop.f32.mrb[0].mxu0
    %v608 = vadd.f32 0.0, %v607
    %v609 = vpop.f32.mrb[0].mxu0
    %v610 = vadd.f32 0.0, %v609
    %611 = vmatprep.mubr.bf16.mxu0 0
    %612 = vmatmul.mubr.bf16.gmra.mrb[0].mxu0 %v244
    %v613 = vpop.f32.mrb[0].mxu0
    %v614 = vadd.f32 0.0, %v613
    %v615 = vpop.f32.mrb[0].mxu0
    %v616 = vadd.f32 0.0, %v615
    %v617 = vpop.f32.mrb[0].mxu0
    %v618 = vadd.f32 0.0, %v617
    %v619 = vpop.f32.mrb[0].mxu0
    %v620 = vadd.f32 0.0, %v619
    %621 = vmatprep.mubr.bf16.mxu0 0
    %622 = vmatmul.mubr.bf16.gmra.mrb[0].mxu0 %v245
    %v623 = vpop.f32.mrb[0].mxu0
    %v624 = vadd.f32 0.0, %v623
    %v625 = vpop.f32.mrb[0].mxu0
    %v626 = vadd.f32 0.0, %v625
    %v627 = vpop.f32.mrb[0].mxu0
    %v628 = vadd.f32 0.0, %v627
    %v629 = vpop.f32.mrb[0].mxu0
    %v630 = vadd.f32 0.0, %v629
    %631 = vmatprep.mubr.bf16.mxu0 0
    %632 = vmatmul.mubr.bf16.gmra.mrb[0].mxu0 %v246
    %v633 = vpop.f32.mrb[0].mxu0
    %v634 = vadd.f32 0.0, %v633
    %v635 = vpop.f32.mrb[0].mxu0
    %v636 = vadd.f32 0.0, %v635
    %v637 = vpop.f32.mrb[0].mxu0
    %v638 = vadd.f32 0.0, %v637
    %v639 = vpop.f32.mrb[0].mxu0
    %v640 = vadd.f32 0.0, %v639
    %641 = vmatprep.mubr.bf16.mxu0 0
    %642 = vmatmul.mubr.bf16.gmra.mrb[0].mxu0 %v247
    %v643 = vpop.f32.mrb[0].mxu0
    %v644 = vadd.f32 0.0, %v643
    %v645 = vpop.f32.mrb[0].mxu0
    %v646 = vadd.f32 0.0, %v645
    %v647 = vpop.f32.mrb[0].mxu0
    %v648 = vadd.f32 0.0, %v647
    %v649 = vpop.f32.mrb[0].mxu0
    %v650 = vadd.f32 0.0, %v649
    %651 = vmatprep.mubr.bf16.mxu0 0
    %652 = vmatmul.mubr.bf16.gmra.mrb[0].mxu0 %v248
    %v653 = vpop.f32.mrb[0].mxu0
    %v654 = vadd.f32 0.0, %v653
    %v655 = vpop.f32.mrb[0].mxu0
    %v656 = vadd.f32 0.0, %v655
    %v657 = vpop.f32.mrb[0].mxu0
    %v658 = vadd.f32 0.0, %v657
    %v659 = vpop.f32.mrb[0].mxu0
    %v660 = vadd.f32 0.0, %v659
    %661 = vmatprep.mubr.bf16.mxu0 0
    %662 = vmatmul.mubr.bf16.gmra.mrb[0].mxu0 %v249
    %v663 = vpop.f32.mrb[0].mxu0
    %v664 = vadd.f32 0.0, %v663
    %v665 = vpop.f32.mrb[0].mxu0
    %v666 = vadd.f32 0.0, %v665
    %v667 = vpop.f32.mrb[0].mxu0
    %v668 = vadd.f32 0.0, %v667
    %v669 = vpop.f32.mrb[0].mxu0
    %v670 = vadd.f32 0.0, %v669
    %671 = vmatprep.mubr.bf16.mxu0 0
    %672 = vmatmul.mubr.bf16.gmra.mrb[0].mxu0 %v250
    %v673 = vpop.f32.mrb[0].mxu0
    %v674 = vadd.f32 0.0, %v673
    %v675 = vpop.f32.mrb[0].mxu0
    %v676 = vadd.f32 0.0, %v675
    %v677 = vpop.f32.mrb[0].mxu0
    %v678 = vadd.f32 0.0, %v677
    %v679 = vpop.f32.mrb[0].mxu0
    %v680 = vadd.f32 0.0, %v679
    %681 = vmatprep.mubr.bf16.mxu0 0
    %682 = vmatmul.mubr.bf16.gmra.mrb[0].mxu0 %v251
    %v683 = vpop.f32.mrb[0].mxu0
    %v684 = vadd.f32 0.0, %v683
    %v685 = vpop.f32.mrb[0].mxu0
    %v686 = vadd.f32 0.0, %v685
    %v687 = vpop.f32.mrb[0].mxu0
    %v688 = vadd.f32 0.0, %v687
    %v689 = vpop.f32.mrb[0].mxu0
    %v690 = vadd.f32 0.0, %v689
    %691 = vmatprep.mubr.bf16.mxu0 0
    %692 = vmatmul.mubr.bf16.gmra.mrb[0].mxu0 %v252
    %v693 = vpop.f32.mrb[0].mxu0
    %v694 = vadd.f32 0.0, %v693
    %v695 = vpop.f32.mrb[0].mxu0
    %v696 = vadd.f32 0.0, %v695
    %v697 = vpop.f32.mrb[0].mxu0
    %v698 = vadd.f32 0.0, %v697
    %v699 = vpop.f32.mrb[0].mxu0
    %v700 = vadd.f32 0.0, %v699
    %701 = vdwg.mxu0
    %702 = vmatprep.subr.bf16.mxu0 %v416
    %703 = vmatpush1.bf16.msra.mxu0 %v415
    %704 = vmatprep.subr.bf16.mxu0 %v422
    %705 = vmatpush1.bf16.msra.mxu0 %v421
    %706 = vmatprep.subr.bf16.mxu0 %v428
    %707 = vmatpush1.bf16.msra.mxu0 %v427
    %708 = vmatprep.subr.bf16.mxu0 %v434
    %709 = vmatpush1.bf16.msra.mxu0 %v433
    %710 = vmatprep.subr.bf16.mxu0 %v440
    %711 = vmatpush1.bf16.msra.mxu0 %v439
    %712 = vmatprep.subr.bf16.mxu0 %v446
    %713 = vmatpush1.bf16.msra.mxu0 %v445
    %714 = vmatprep.subr.bf16.mxu0 %v452
    %715 = vmatpush1.bf16.msra.mxu0 %v451
    %716 = vmatprep.subr.bf16.mxu0 %v458
    %717 = vmatpush1.bf16.msra.mxu0 %v457
    %718 = vmatprep.subr.bf16.mxu0 0
    %719 = vmatpush1.bf16.msra.mxu0 0
    %720 = vmatprep.subr.bf16.mxu0 0
    %721 = vmatpush1.bf16.msra.mxu0 0
    %722 = vmatprep.subr.bf16.mxu0 0
    %723 = vmatpush1.bf16.msra.mxu0 0
    %724 = vmatprep.subr.bf16.mxu0 0
    %725 = vmatpush1.bf16.msra.mxu0 0
    %726 = vmatprep.subr.bf16.mxu0 0
    %727 = vmatpush1.bf16.msra.mxu0 0
    %728 = vmatprep.subr.bf16.mxu0 0
    %729 = vmatpush1.bf16.msra.mxu0 0
    %730 = vmatprep.subr.bf16.mxu0 0
    %731 = vmatpush1.bf16.msra.mxu0 0
    %732 = vmatprep.subr.bf16.mxu0 0
    %733 = vmatpush1.bf16.msra.mxu0 0
    %734 = vmatprep.mubr.bf16.mxu0 0
    %735 = vmatmul.mubr.bf16.gmra.mrb[0].mxu0 %v237
    %v736 = vpop.f32.mrb[0].mxu0
    %v737 = vadd.f32 0.0, %v736
    %v738 = vpop.f32.mrb[0].mxu0
    %v739 = vadd.f32 0.0, %v738
    %v740 = vpop.f32.mrb[0].mxu0
    %v741 = vadd.f32 0.0, %v740
    %v742 = vpop.f32.mrb[0].mxu0
    %v743 = vadd.f32 0.0, %v742
    %744 = vmatprep.mubr.bf16.mxu0 0
    %745 = vmatmul.mubr.bf16.gmra.mrb[0].mxu0 %v238
    %v746 = vpop.f32.mrb[0].mxu0
    %v747 = vadd.f32 0.0, %v746
    %v748 = vpop.f32.mrb[0].mxu0
    %v749 = vadd.f32 0.0, %v748
    %v750 = vpop.f32.mrb[0].mxu0
    %v751 = vadd.f32 0.0, %v750
    %v752 = vpop.f32.mrb[0].mxu0
    %v753 = vadd.f32 0.0, %v752
    %754 = vmatprep.mubr.bf16.mxu0 0
    %755 = vmatmul.mubr.bf16.gmra.mrb[0].mxu0 %v239
    %v756 = vpop.f32.mrb[0].mxu0
    %v757 = vadd.f32 0.0, %v756
    %v758 = vpop.f32.mrb[0].mxu0
    %v759 = vadd.f32 0.0, %v758
    %v760 = vpop.f32.mrb[0].mxu0
    %v761 = vadd.f32 0.0, %v760
    %v762 = vpop.f32.mrb[0].mxu0
    %v763 = vadd.f32 0.0, %v762
    %764 = vmatprep.mubr.bf16.mxu0 0
    %765 = vmatmul.mubr.bf16.gmra.mrb[0].mxu0 %v240
    %v766 = vpop.f32.mrb[0].mxu0
    %v767 = vadd.f32 0.0, %v766
    %v768 = vpop.f32.mrb[0].mxu0
    %v769 = vadd.f32 0.0, %v768
    %v770 = vpop.f32.mrb[0].mxu0
    %v771 = vadd.f32 0.0, %v770
    %v772 = vpop.f32.mrb[0].mxu0
    %v773 = vadd.f32 0.0, %v772
    %774 = vmatprep.mubr.bf16.mxu0 0
    %775 = vmatmul.mubr.bf16.gmra.mrb[0].mxu0 %v241
    %v776 = vpop.f32.mrb[0].mxu0
    %v777 = vadd.f32 0.0, %v776
    %v778 = vpop.f32.mrb[0].mxu0
    %v779 = vadd.f32 0.0, %v778
    %v780 = vpop.f32.mrb[0].mxu0
    %v781 = vadd.f32 0.0, %v780
    %v782 = vpop.f32.mrb[0].mxu0
    %v783 = vadd.f32 0.0, %v782
    %784 = vmatprep.mubr.bf16.mxu0 0
    %785 = vmatmul.mubr.bf16.gmra.mrb[0].mxu0 %v242
    %v786 = vpop.f32.mrb[0].mxu0
    %v787 = vadd.f32 0.0, %v786
    %v788 = vpop.f32.mrb[0].mxu0
    %v789 = vadd.f32 0.0, %v788
    %v790 = vpop.f32.mrb[0].mxu0
    %v791 = vadd.f32 0.0, %v790
    %v792 = vpop.f32.mrb[0].mxu0
    %v793 = vadd.f32 0.0, %v792
    %794 = vmatprep.mubr.bf16.mxu0 0
    %795 = vmatmul.mubr.bf16.gmra.mrb[0].mxu0 %v243
    %v796 = vpop.f32.mrb[0].mxu0
    %v797 = vadd.f32 0.0, %v796
    %v798 = vpop.f32.mrb[0].mxu0
    %v799 = vadd.f32 0.0, %v798
    %v800 = vpop.f32.mrb[0].mxu0
    %v801 = vadd.f32 0.0, %v800
    %v802 = vpop.f32.mrb[0].mxu0
    %v803 = vadd.f32 0.0, %v802
    %804 = vmatprep.mubr.bf16.mxu0 0
    %805 = vmatmul.mubr.bf16.gmra.mrb[0].mxu0 %v244
    %v806 = vpop.f32.mrb[0].mxu0
    %v807 = vadd.f32 0.0, %v806
    %v808 = vpop.f32.mrb[0].mxu0
    %v809 = vadd.f32 0.0, %v808
    %v810 = vpop.f32.mrb[0].mxu0
    %v811 = vadd.f32 0.0, %v810
    %v812 = vpop.f32.mrb[0].mxu0
    %v813 = vadd.f32 0.0, %v812
    %814 = vmatprep.mubr.bf16.mxu0 0
    %815 = vmatmul.mubr.bf16.gmra.mrb[0].mxu0 %v245
    %v816 = vpop.f32.mrb[0].mxu0
    %v817 = vadd.f32 0.0, %v816
    %v818 = vpop.f32.mrb[0].mxu0
    %v819 = vadd.f32 0.0, %v818
    %v820 = vpop.f32.mrb[0].mxu0
    %v821 = vadd.f32 0.0, %v820
    %v822 = vpop.f32.mrb[0].mxu0
    %v823 = vadd.f32 0.0, %v822
    %824 = vmatprep.mubr.bf16.mxu0 0
    %825 = vmatmul.mubr.bf16.gmra.mrb[0].mxu0 %v246
    %v826 = vpop.f32.mrb[0].mxu0
    %v827 = vadd.f32 0.0, %v826
    %v828 = vpop.f32.mrb[0].mxu0
    %v829 = vadd.f32 0.0, %v828
    %v830 = vpop.f32.mrb[0].mxu0
    %v831 = vadd.f32 0.0, %v830
    %v832 = vpop.f32.mrb[0].mxu0
    %v833 = vadd.f32 0.0, %v832
    %834 = vmatprep.mubr.bf16.mxu0 0
    %835 = vmatmul.mubr.bf16.gmra.mrb[0].mxu0 %v247
    %v836 = vpop.f32.mrb[0].mxu0
    %v837 = vadd.f32 0.0, %v836
    %v838 = vpop.f32.mrb[0].mxu0
    %v839 = vadd.f32 0.0, %v838
    %v840 = vpop.f32.mrb[0].mxu0
    %v841 = vadd.f32 0.0, %v840
    %v842 = vpop.f32.mrb[0].mxu0
    %v843 = vadd.f32 0.0, %v842
    %844 = vmatprep.mubr.bf16.mxu0 0
    %845 = vmatmul.mubr.bf16.gmra.mrb[0].mxu0 %v248
    %v846 = vpop.f32.mrb[0].mxu0
    %v847 = vadd.f32 0.0, %v846
    %v848 = vpop.f32.mrb[0].mxu0
    %v849 = vadd.f32 0.0, %v848
    %v850 = vpop.f32.mrb[0].mxu0
    %v851 = vadd.f32 0.0, %v850
    %v852 = vpop.f32.mrb[0].mxu0
    %v853 = vadd.f32 0.0, %v852
    %854 = vmatprep.mubr.bf16.mxu0 0
    %855 = vmatmul.mubr.bf16.gmra.mrb[0].mxu0 %v249
    %v856 = vpop.f32.mrb[0].mxu0
    %v857 = vadd.f32 0.0, %v856
    %v858 = vpop.f32.mrb[0].mxu0
    %v859 = vadd.f32 0.0, %v858
    %v860 = vpop.f32.mrb[0].mxu0
    %v861 = vadd.f32 0.0, %v860
    %v862 = vpop.f32.mrb[0].mxu0
    %v863 = vadd.f32 0.0, %v862
    %864 = vmatprep.mubr.bf16.mxu0 0
    %865 = vmatmul.mubr.bf16.gmra.mrb[0].mxu0 %v250
    %v866 = vpop.f32.mrb[0].mxu0
    %v867 = vadd.f32 0.0, %v866
    %v868 = vpop.f32.mrb[0].mxu0
    %v869 = vadd.f32 0.0, %v868
    %v870 = vpop.f32.mrb[0].mxu0
    %v871 = vadd.f32 0.0, %v870
    %v872 = vpop.f32.mrb[0].mxu0
    %v873 = vadd.f32 0.0, %v872
    %874 = vmatprep.mubr.bf16.mxu0 0
    %875 = vmatmul.mubr.bf16.gmra.mrb[0].mxu0 %v251
    %v876 = vpop.f32.mrb[0].mxu0
    %v877 = vadd.f32 0.0, %v876
    %v878 = vpop.f32.mrb[0].mxu0
    %v879 = vadd.f32 0.0, %v878
    %v880 = vpop.f32.mrb[0].mxu0
    %v881 = vadd.f32 0.0, %v880
    %v882 = vpop.f32.mrb[0].mxu0
    %v883 = vadd.f32 0.0, %v882
    %884 = vmatprep.mubr.bf16.mxu0 0
    %885 = vmatmul.mubr.bf16.gmra.mrb[0].mxu0 %v252
    %v886 = vpop.f32.mrb[0].mxu0
    %v887 = vadd.f32 0.0, %v886
    %v888 = vpop.f32.mrb[0].mxu0
    %v889 = vadd.f32 0.0, %v888
    %v890 = vpop.f32.mrb[0].mxu0
    %v891 = vadd.f32 0.0, %v890
    %v892 = vpop.f32.mrb[0].mxu0
    %v893 = vadd.f32 0.0, %v892
    %894 = vdwg.mxu0
    %895 = vmatprep.subr.bf16.mxu0 %v418
    %896 = vmatpush1.bf16.msra.mxu0 %v417
    %897 = vmatprep.subr.bf16.mxu0 %v424
    %898 = vmatpush1.bf16.msra.mxu0 %v423
    %899 = vmatprep.subr.bf16.mxu0 %v430
    %900 = vmatpush1.bf16.msra.mxu0 %v429
    %901 = vmatprep.subr.bf16.mxu0 %v436
    %902 = vmatpush1.bf16.msra.mxu0 %v435
    %903 = vmatprep.subr.bf16.mxu0 %v442
    %904 = vmatpush1.bf16.msra.mxu0 %v441
    %905 = vmatprep.subr.bf16.mxu0 %v448
    %906 = vmatpush1.bf16.msra.mxu0 %v447
    %907 = vmatprep.subr.bf16.mxu0 %v454
    %908 = vmatpush1.bf16.msra.mxu0 %v453
    %909 = vmatprep.subr.bf16.mxu0 %v460
    %910 = vmatpush1.bf16.msra.mxu0 %v459
    %911 = vmatprep.subr.bf16.mxu0 0
    %912 = vmatpush1.bf16.msra.mxu0 0
    %913 = vmatprep.subr.bf16.mxu0 0
    %914 = vmatpush1.bf16.msra.mxu0 0
    %915 = vmatprep.subr.bf16.mxu0 0
    %916 = vmatpush1.bf16.msra.mxu0 0
    %917 = vmatprep.subr.bf16.mxu0 0
    %918 = vmatpush1.bf16.msra.mxu0 0
    %919 = vmatprep.subr.bf16.mxu0 0
    %920 = vmatpush1.bf16.msra.mxu0 0
    %921 = vmatprep.subr.bf16.mxu0 0
    %922 = vmatpush1.bf16.msra.mxu0 0
    %923 = vmatprep.subr.bf16.mxu0 0
    %924 = vmatpush1.bf16.msra.mxu0 0
    %925 = vmatprep.subr.bf16.mxu0 0
    %926 = vmatpush1.bf16.msra.mxu0 0
    %927 = vmatprep.mubr.bf16.mxu0 0
    %928 = vmatmul.mubr.bf16.gmra.mrb[0].mxu0 %v237
    %v929 = vpop.f32.mrb[0].mxu0
    %v930 = vadd.f32 0.0, %v929
    %v931 = vpop.f32.mrb[0].mxu0
    %v932 = vadd.f32 0.0, %v931
    %v933 = vpop.f32.mrb[0].mxu0
    %v934 = vadd.f32 0.0, %v933
    %v935 = vpop.f32.mrb[0].mxu0
    %v936 = vadd.f32 0.0, %v935
    %937 = vmatprep.mubr.bf16.mxu0 0
    %938 = vmatmul.mubr.bf16.gmra.mrb[0].mxu0 %v238
    %v939 = vpop.f32.mrb[0].mxu0
    %v940 = vadd.f32 0.0, %v939
    %v941 = vpop.f32.mrb[0].mxu0
    %v942 = vadd.f32 0.0, %v941
    %v943 = vpop.f32.mrb[0].mxu0
    %v944 = vadd.f32 0.0, %v943
    %v945 = vpop.f32.mrb[0].mxu0
    %v946 = vadd.f32 0.0, %v945
    %947 = vmatprep.mubr.bf16.mxu0 0
    %948 = vmatmul.mubr.bf16.gmra.mrb[0].mxu0 %v239
    %v949 = vpop.f32.mrb[0].mxu0
    %v950 = vadd.f32 0.0, %v949
    %v951 = vpop.f32.mrb[0].mxu0
    %v952 = vadd.f32 0.0, %v951
    %v953 = vpop.f32.mrb[0].mxu0
    %v954 = vadd.f32 0.0, %v953
    %v955 = vpop.f32.mrb[0].mxu0
    %v956 = vadd.f32 0.0, %v955
    %957 = vmatprep.mubr.bf16.mxu0 0
    %958 = vmatmul.mubr.bf16.gmra.mrb[0].mxu0 %v240
    %v959 = vpop.f32.mrb[0].mxu0
    %v960 = vadd.f32 0.0, %v959
    %v961 = vpop.f32.mrb[0].mxu0
    %v962 = vadd.f32 0.0, %v961
    %v963 = vpop.f32.mrb[0].mxu0
    %v964 = vadd.f32 0.0, %v963
    %v965 = vpop.f32.mrb[0].mxu0
    %v966 = vadd.f32 0.0, %v965
    %967 = vmatprep.mubr.bf16.mxu0 0
    %968 = vmatmul.mubr.bf16.gmra.mrb[0].mxu0 %v241
    %v969 = vpop.f32.mrb[0].mxu0
    %v970 = vadd.f32 0.0, %v969
    %v971 = vpop.f32.mrb[0].mxu0
    %v972 = vadd.f32 0.0, %v971
    %v973 = vpop.f32.mrb[0].mxu0
    %v974 = vadd.f32 0.0, %v973
    %v975 = vpop.f32.mrb[0].mxu0
    %v976 = vadd.f32 0.0, %v975
    %977 = vmatprep.mubr.bf16.mxu0 0
    %978 = vmatmul.mubr.bf16.gmra.mrb[0].mxu0 %v242
    %v979 = vpop.f32.mrb[0].mxu0
    %v980 = vadd.f32 0.0, %v979
    %v981 = vpop.f32.mrb[0].mxu0
    %v982 = vadd.f32 0.0, %v981
    %v983 = vpop.f32.mrb[0].mxu0
    %v984 = vadd.f32 0.0, %v983
    %v985 = vpop.f32.mrb[0].mxu0
    %v986 = vadd.f32 0.0, %v985
    %987 = vmatprep.mubr.bf16.mxu0 0
    %988 = vmatmul.mubr.bf16.gmra.mrb[0].mxu0 %v243
    %v989 = vpop.f32.mrb[0].mxu0
    %v990 = vadd.f32 0.0, %v989
    %v991 = vpop.f32.mrb[0].mxu0
    %v992 = vadd.f32 0.0, %v991
    %v993 = vpop.f32.mrb[0].mxu0
    %v994 = vadd.f32 0.0, %v993
    %v995 = vpop.f32.mrb[0].mxu0
    %v996 = vadd.f32 0.0, %v995
    %997 = vmatprep.mubr.bf16.mxu0 0
    %998 = vmatmul.mubr.bf16.gmra.mrb[0].mxu0 %v244
    %v999 = vpop.f32.mrb[0].mxu0
    %v1000 = vadd.f32 0.0, %v999
    %v1001 = vpop.f32.mrb[0].mxu0
    %v1002 = vadd.f32 0.0, %v1001
    %v1003 = vpop.f32.mrb[0].mxu0
    %v1004 = vadd.f32 0.0, %v1003
    %v1005 = vpop.f32.mrb[0].mxu0
    %v1006 = vadd.f32 0.0, %v1005
    %1007 = vmatprep.mubr.bf16.mxu0 0
    %1008 = vmatmul.mubr.bf16.gmra.mrb[0].mxu0 %v245
    %v1009 = vpop.f32.mrb[0].mxu0
    %v1010 = vadd.f32 0.0, %v1009
    %v1011 = vpop.f32.mrb[0].mxu0
    %v1012 = vadd.f32 0.0, %v1011
    %v1013 = vpop.f32.mrb[0].mxu0
    %v1014 = vadd.f32 0.0, %v1013
    %v1015 = vpop.f32.mrb[0].mxu0
    %v1016 = vadd.f32 0.0, %v1015
    %1017 = vmatprep.mubr.bf16.mxu0 0
    %1018 = vmatmul.mubr.bf16.gmra.mrb[0].mxu0 %v246
    %v1019 = vpop.f32.mrb[0].mxu0
    %v1020 = vadd.f32 0.0, %v1019
    %v1021 = vpop.f32.mrb[0].mxu0
    %v1022 = vadd.f32 0.0, %v1021
    %v1023 = vpop.f32.mrb[0].mxu0
    %v1024 = vadd.f32 0.0, %v1023
    %v1025 = vpop.f32.mrb[0].mxu0
    %v1026 = vadd.f32 0.0, %v1025
    %1027 = vmatprep.mubr.bf16.mxu0 0
    %1028 = vmatmul.mubr.bf16.gmra.mrb[0].mxu0 %v247
    %v1029 = vpop.f32.mrb[0].mxu0
    %v1030 = vadd.f32 0.0, %v1029
    %v1031 = vpop.f32.mrb[0].mxu0
    %v1032 = vadd.f32 0.0, %v1031
    %v1033 = vpop.f32.mrb[0].mxu0
    %v1034 = vadd.f32 0.0, %v1033
    %v1035 = vpop.f32.mrb[0].mxu0
    %v1036 = vadd.f32 0.0, %v1035
    %1037 = vmatprep.mubr.bf16.mxu0 0
    %1038 = vmatmul.mubr.bf16.gmra.mrb[0].mxu0 %v248
    %v1039 = vpop.f32.mrb[0].mxu0
    %v1040 = vadd.f32 0.0, %v1039
    %v1041 = vpop.f32.mrb[0].mxu0
    %v1042 = vadd.f32 0.0, %v1041
    %v1043 = vpop.f32.mrb[0].mxu0
    %v1044 = vadd.f32 0.0, %v1043
    %v1045 = vpop.f32.mrb[0].mxu0
    %v1046 = vadd.f32 0.0, %v1045
    %1047 = vmatprep.mubr.bf16.mxu0 0
    %1048 = vmatmul.mubr.bf16.gmra.mrb[0].mxu0 %v249
    %v1049 = vpop.f32.mrb[0].mxu0
    %v1050 = vadd.f32 0.0, %v1049
    %v1051 = vpop.f32.mrb[0].mxu0
    %v1052 = vadd.f32 0.0, %v1051
    %v1053 = vpop.f32.mrb[0].mxu0
    %v1054 = vadd.f32 0.0, %v1053
    %v1055 = vpop.f32.mrb[0].mxu0
    %v1056 = vadd.f32 0.0, %v1055
    %1057 = vmatprep.mubr.bf16.mxu0 0
    %1058 = vmatmul.mubr.bf16.gmra.mrb[0].mxu0 %v250
    %v1059 = vpop.f32.mrb[0].mxu0
    %v1060 = vadd.f32 0.0, %v1059
    %v1061 = vpop.f32.mrb[0].mxu0
    %v1062 = vadd.f32 0.0, %v1061
    %v1063 = vpop.f32.mrb[0].mxu0
    %v1064 = vadd.f32 0.0, %v1063
    %v1065 = vpop.f32.mrb[0].mxu0
    %v1066 = vadd.f32 0.0, %v1065
    %1067 = vmatprep.mubr.bf16.mxu0 0
    %1068 = vmatmul.mubr.bf16.gmra.mrb[0].mxu0 %v251
    %v1069 = vpop.f32.mrb[0].mxu0
    %v1070 = vadd.f32 0.0, %v1069
    %v1071 = vpop.f32.mrb[0].mxu0
    %v1072 = vadd.f32 0.0, %v1071
    %v1073 = vpop.f32.mrb[0].mxu0
    %v1074 = vadd.f32 0.0, %v1073
    %v1075 = vpop.f32.mrb[0].mxu0
    %v1076 = vadd.f32 0.0, %v1075
    %1077 = vmatprep.mubr.bf16.mxu0 0
    %1078 = vmatmul.mubr.bf16.gmra.mrb[0].mxu0 %v252
    %v1079 = vpop.f32.mrb[0].mxu0
    %v1080 = vadd.f32 0.0, %v1079
    %v1081 = vpop.f32.mrb[0].mxu0
    %v1082 = vadd.f32 0.0, %v1081
    %v1083 = vpop.f32.mrb[0].mxu0
    %v1084 = vadd.f32 0.0, %v1083
    %v1085 = vpop.f32.mrb[0].mxu0
    %v1086 = vadd.f32 0.0, %v1085
    %1087 = vdwg.mxu0
    %v1088 = vmul.f32 %v544, %v739
    %v1089 = vmul.f32 %v546, %v930
    %v1090 = vmul.f32 %v737, %v932
    %v1091 = vmul.f32 %v548, %v743
    %v1092 = vmul.f32 %v550, %v934
    %v1093 = vmul.f32 %v741, %v936
    %v1094 = vmul.f32 %v554, %v749
    %v1095 = vmul.f32 %v556, %v940
    %v1096 = vmul.f32 %v747, %v942
    %v1097 = vmul.f32 %v558, %v753
    %v1098 = vmul.f32 %v560, %v944
    %v1099 = vmul.f32 %v751, %v946
    %v1100 = vmul.f32 %v564, %v759
    %v1101 = vmul.f32 %v566, %v950
    %v1102 = vmul.f32 %v757, %v952
    %v1103 = vmul.f32 %v568, %v763
    %v1104 = vmul.f32 %v570, %v954
    %v1105 = vmul.f32 %v761, %v956
    %v1106 = vmul.f32 %v574, %v769
    %v1107 = vmul.f32 %v576, %v960
    %v1108 = vmul.f32 %v767, %v962
    %v1109 = vmul.f32 %v578, %v773
    %v1110 = vmul.f32 %v580, %v964
    %v1111 = vmul.f32 %v771, %v966
    %v1112 = vmul.f32 %v584, %v779
    %v1113 = vmul.f32 %v586, %v970
    %v1114 = vmul.f32 %v777, %v972
    %v1115 = vmul.f32 %v588, %v783
    %v1116 = vmul.f32 %v590, %v974
    %v1117 = vmul.f32 %v781, %v976
    %v1118 = vmul.f32 %v594, %v789
    %v1119 = vmul.f32 %v596, %v980
    %v1120 = vmul.f32 %v787, %v982
    %v1121 = vmul.f32 %v598, %v793
    %v1122 = vmul.f32 %v600, %v984
    %v1123 = vmul.f32 %v791, %v986
    %v1124 = vmul.f32 %v604, %v799
    %v1125 = vmul.f32 %v606, %v990
    %v1126 = vmul.f32 %v797, %v992
    %v1127 = vmul.f32 %v608, %v803
    %v1128 = vmul.f32 %v610, %v994
    %v1129 = vmul.f32 %v801, %v996
    %v1130 = vmul.f32 %v614, %v809
    %v1131 = vmul.f32 %v616, %v1000
    %v1132 = vmul.f32 %v807, %v1002
    %v1133 = vmul.f32 %v618, %v813
    %v1134 = vmul.f32 %v620, %v1004
    %v1135 = vmul.f32 %v811, %v1006
    %v1136 = vmul.f32 %v624, %v819
    %v1137 = vmul.f32 %v626, %v1010
    %v1138 = vmul.f32 %v817, %v1012
    %v1139 = vmul.f32 %v628, %v823
    %v1140 = vmul.f32 %v630, %v1014
    %v1141 = vmul.f32 %v821, %v1016
    %v1142 = vmul.f32 %v634, %v829
    %v1143 = vmul.f32 %v636, %v1020
    %v1144 = vmul.f32 %v827, %v1022
    %v1145 = vmul.f32 %v638, %v833
    %v1146 = vmul.f32 %v640, %v1024
    %v1147 = vmul.f32 %v831, %v1026
    %v1148 = vmul.f32 %v644, %v839
    %v1149 = vmul.f32 %v646, %v1030
    %v1150 = vmul.f32 %v837, %v1032
    %v1151 = vmul.f32 %v648, %v843
    %v1152 = vmul.f32 %v650, %v1034
    %v1153 = vmul.f32 %v841, %v1036
    %v1154 = vmul.f32 %v654, %v849
    %v1155 = vmul.f32 %v656, %v1040
    %v1156 = vmul.f32 %v847, %v1042
    %v1157 = vmul.f32 %v658, %v853
    %v1158 = vmul.f32 %v660, %v1044
    %v1159 = vmul.f32 %v851, %v1046
    %v1160 = vmul.f32 %v664, %v859
    %v1161 = vmul.f32 %v666, %v1050
    %v1162 = vmul.f32 %v857, %v1052
    %v1163 = vmul.f32 %v668, %v863
    %v1164 = vmul.f32 %v670, %v1054
    %v1165 = vmul.f32 %v861, %v1056
    %v1166 = vmul.f32 %v674, %v869
    %v1167 = vmul.f32 %v676, %v1060
    %v1168 = vmul.f32 %v867, %v1062
    %v1169 = vmul.f32 %v678, %v873
    %v1170 = vmul.f32 %v680, %v1064
    %v1171 = vmul.f32 %v871, %v1066
    %v1172 = vmul.f32 %v684, %v879
    %v1173 = vmul.f32 %v686, %v1070
    %v1174 = vmul.f32 %v877, %v1072
    %v1175 = vmul.f32 %v688, %v883
    %v1176 = vmul.f32 %v690, %v1074
    %v1177 = vmul.f32 %v881, %v1076
    %v1178 = vmul.f32 %v694, %v889
    %v1179 = vmul.f32 %v696, %v1080
    %v1180 = vmul.f32 %v887, %v1082
    %v1181 = vmul.f32 %v698, %v893
    %v1182 = vmul.f32 %v700, %v1084
    %v1183 = vmul.f32 %v891, %v1086
    %v1184 = vxor.u32 %v1088, 2147483648
    %v1185 = vxor.u32 %v1089, 2147483648
    %v1186 = vxor.u32 %v1090, 2147483648
    %v1187 = vxor.u32 %v1091, 2147483648
    %v1188 = vxor.u32 %v1092, 2147483648
    %v1189 = vxor.u32 %v1093, 2147483648
    %v1190 = vxor.u32 %v1094, 2147483648
    %v1191 = vxor.u32 %v1095, 2147483648
    %v1192 = vxor.u32 %v1096, 2147483648
    %v1193 = vxor.u32 %v1097, 2147483648
    %v1194 = vxor.u32 %v1098, 2147483648
    %v1195 = vxor.u32 %v1099, 2147483648
    %v1196 = vxor.u32 %v1100, 2147483648
    %v1197 = vxor.u32 %v1101, 2147483648
    %v1198 = vxor.u32 %v1102, 2147483648
    %v1199 = vxor.u32 %v1103, 2147483648
    %v1200 = vxor.u32 %v1104, 2147483648
    %v1201 = vxor.u32 %v1105, 2147483648
    %v1202 = vxor.u32 %v1106, 2147483648
    %v1203 = vxor.u32 %v1107, 2147483648
    %v1204 = vxor.u32 %v1108, 2147483648
    %v1205 = vxor.u32 %v1109, 2147483648
    %v1206 = vxor.u32 %v1110, 2147483648
    %v1207 = vxor.u32 %v1111, 2147483648
    %v1208 = vxor.u32 %v1112, 2147483648
    %v1209 = vxor.u32 %v1113, 2147483648
    %v1210 = vxor.u32 %v1114, 2147483648
    %v1211 = vxor.u32 %v1115, 2147483648
    %v1212 = vxor.u32 %v1116, 2147483648
    %v1213 = vxor.u32 %v1117, 2147483648
    %v1214 = vxor.u32 %v1118, 2147483648
    %v1215 = vxor.u32 %v1119, 2147483648
    %v1216 = vxor.u32 %v1120, 2147483648
    %v1217 = vxor.u32 %v1121, 2147483648
    %v1218 = vxor.u32 %v1122, 2147483648
    %v1219 = vxor.u32 %v1123, 2147483648
    %v1220 = vxor.u32 %v1124, 2147483648
    %v1221 = vxor.u32 %v1125, 2147483648
    %v1222 = vxor.u32 %v1126, 2147483648
    %v1223 = vxor.u32 %v1127, 2147483648
    %v1224 = vxor.u32 %v1128, 2147483648
    %v1225 = vxor.u32 %v1129, 2147483648
    %v1226 = vxor.u32 %v1130, 2147483648
    %v1227 = vxor.u32 %v1131, 2147483648
    %v1228 = vxor.u32 %v1132, 2147483648
    %v1229 = vxor.u32 %v1133, 2147483648
    %v1230 = vxor.u32 %v1134, 2147483648
    %v1231 = vxor.u32 %v1135, 2147483648
    %v1232 = vxor.u32 %v1136, 2147483648
    %v1233 = vxor.u32 %v1137, 2147483648
    %v1234 = vxor.u32 %v1138, 2147483648
    %v1235 = vxor.u32 %v1139, 2147483648
    %v1236 = vxor.u32 %v1140, 2147483648
    %v1237 = vxor.u32 %v1141, 2147483648
    %v1238 = vxor.u32 %v1142, 2147483648
    %v1239 = vxor.u32 %v1143, 2147483648
    %v1240 = vxor.u32 %v1144, 2147483648
    %v1241 = vxor.u32 %v1145, 2147483648
    %v1242 = vxor.u32 %v1146, 2147483648
    %v1243 = vxor.u32 %v1147, 2147483648
    %v1244 = vxor.u32 %v1148, 2147483648
    %v1245 = vxor.u32 %v1149, 2147483648
    %v1246 = vxor.u32 %v1150, 2147483648
    %v1247 = vxor.u32 %v1151, 2147483648
    %v1248 = vxor.u32 %v1152, 2147483648
    %v1249 = vxor.u32 %v1153, 2147483648
    %v1250 = vxor.u32 %v1154, 2147483648
    %v1251 = vxor.u32 %v1155, 2147483648
    %v1252 = vxor.u32 %v1156, 2147483648
    %v1253 = vxor.u32 %v1157, 2147483648
    %v1254 = vxor.u32 %v1158, 2147483648
    %v1255 = vxor.u32 %v1159, 2147483648
    %v1256 = vxor.u32 %v1160, 2147483648
    %v1257 = vxor.u32 %v1161, 2147483648
    %v1258 = vxor.u32 %v1162, 2147483648
    %v1259 = vxor.u32 %v1163, 2147483648
    %v1260 = vxor.u32 %v1164, 2147483648
    %v1261 = vxor.u32 %v1165, 2147483648
    %v1262 = vxor.u32 %v1166, 2147483648
    %v1263 = vxor.u32 %v1167, 2147483648
    %v1264 = vxor.u32 %v1168, 2147483648
    %v1265 = vxor.u32 %v1169, 2147483648
    %v1266 = vxor.u32 %v1170, 2147483648
    %v1267 = vxor.u32 %v1171, 2147483648
    %v1268 = vxor.u32 %v1172, 2147483648
    %v1269 = vxor.u32 %v1173, 2147483648
    %v1270 = vxor.u32 %v1174, 2147483648
    %v1271 = vxor.u32 %v1175, 2147483648
    %v1272 = vxor.u32 %v1176, 2147483648
    %v1273 = vxor.u32 %v1177, 2147483648
    %v1274 = vxor.u32 %v1178, 2147483648
    %v1275 = vxor.u32 %v1179, 2147483648
    %v1276 = vxor.u32 %v1180, 2147483648
    %v1277 = vxor.u32 %v1181, 2147483648
    %v1278 = vxor.u32 %v1182, 2147483648
    %v1279 = vxor.u32 %v1183, 2147483648
    %v1280 = vmul.f32 %v1184, 1.442695
    %v1281 = vpow.pop %v1280
    %v1282 = vmul.f32 %v1185, 1.442695
    %v1283 = vpow.pop %v1282
    %v1284 = vmul.f32 %v1186, 1.442695
    %v1285 = vpow.pop %v1284
    %v1286 = vmul.f32 %v1187, 1.442695
    %v1287 = vpow.pop %v1286
    %v1288 = vmul.f32 %v1188, 1.442695
    %v1289 = vpow.pop %v1288
    %v1290 = vmul.f32 %v1189, 1.442695
    %v1291 = vpow.pop %v1290
    %v1292 = vmul.f32 %v1190, 1.442695
    %v1293 = vpow.pop %v1292
    %v1294 = vmul.f32 %v1191, 1.442695
    %v1295 = vpow.pop %v1294
    %v1296 = vmul.f32 %v1192, 1.442695
    %v1297 = vpow.pop %v1296
    %v1298 = vmul.f32 %v1193, 1.442695
    %v1299 = vpow.pop %v1298
    %v1300 = vmul.f32 %v1194, 1.442695
    %v1301 = vpow.pop %v1300
    %v1302 = vmul.f32 %v1195, 1.442695
    %v1303 = vpow.pop %v1302
    %v1304 = vmul.f32 %v1196, 1.442695
    %v1305 = vpow.pop %v1304
    %v1306 = vmul.f32 %v1197, 1.442695
    %v1307 = vpow.pop %v1306
    %v1308 = vmul.f32 %v1198, 1.442695
    %v1309 = vpow.pop %v1308
    %v1310 = vmul.f32 %v1199, 1.442695
    %v1311 = vpow.pop %v1310
    %v1312 = vmul.f32 %v1200, 1.442695
    %v1313 = vpow.pop %v1312
    %v1314 = vmul.f32 %v1201, 1.442695
    %v1315 = vpow.pop %v1314
    %v1316 = vmul.f32 %v1202, 1.442695
    %v1317 = vpow.pop %v1316
    %v1318 = vmul.f32 %v1203, 1.442695
    %v1319 = vpow.pop %v1318
    %v1320 = vmul.f32 %v1204, 1.442695
    %v1321 = vpow.pop %v1320
    %v1322 = vmul.f32 %v1205, 1.442695
    %v1323 = vpow.pop %v1322
    %v1324 = vmul.f32 %v1206, 1.442695
    %v1325 = vpow.pop %v1324
    %v1326 = vmul.f32 %v1207, 1.442695
    %v1327 = vpow.pop %v1326
    %v1328 = vmul.f32 %v1208, 1.442695
    %v1329 = vpow.pop %v1328
    %v1330 = vmul.f32 %v1209, 1.442695
    %v1331 = vpow.pop %v1330
    %v1332 = vmul.f32 %v1210, 1.442695
    %v1333 = vpow.pop %v1332
    %v1334 = vmul.f32 %v1211, 1.442695
    %v1335 = vpow.pop %v1334
    %v1336 = vmul.f32 %v1212, 1.442695
    %v1337 = vpow.pop %v1336
    %v1338 = vmul.f32 %v1213, 1.442695
    %v1339 = vpow.pop %v1338
    %v1340 = vmul.f32 %v1214, 1.442695
    %v1341 = vpow.pop %v1340
    %v1342 = vmul.f32 %v1215, 1.442695
    %v1343 = vpow.pop %v1342
    %v1344 = vmul.f32 %v1216, 1.442695
    %v1345 = vpow.pop %v1344
    %v1346 = vmul.f32 %v1217, 1.442695
    %v1347 = vpow.pop %v1346
    %v1348 = vmul.f32 %v1218, 1.442695
    %v1349 = vpow.pop %v1348
    %v1350 = vmul.f32 %v1219, 1.442695
    %v1351 = vpow.pop %v1350
    %v1352 = vmul.f32 %v1220, 1.442695
    %v1353 = vpow.pop %v1352
    %v1354 = vmul.f32 %v1221, 1.442695
    %v1355 = vpow.pop %v1354
    %v1356 = vmul.f32 %v1222, 1.442695
    %v1357 = vpow.pop %v1356
    %v1358 = vmul.f32 %v1223, 1.442695
    %v1359 = vpow.pop %v1358
    %v1360 = vmul.f32 %v1224, 1.442695
    %v1361 = vpow.pop %v1360
    %v1362 = vmul.f32 %v1225, 1.442695
    %v1363 = vpow.pop %v1362
    %v1364 = vmul.f32 %v1226, 1.442695
    %v1365 = vpow.pop %v1364
    %v1366 = vmul.f32 %v1227, 1.442695
    %v1367 = vpow.pop %v1366
    %v1368 = vmul.f32 %v1228, 1.442695
    %v1369 = vpow.pop %v1368
    %v1370 = vmul.f32 %v1229, 1.442695
    %v1371 = vpow.pop %v1370
    %v1372 = vmul.f32 %v1230, 1.442695
    %v1373 = vpow.pop %v1372
    %v1374 = vmul.f32 %v1231, 1.442695
    %v1375 = vpow.pop %v1374
    %v1376 = vmul.f32 %v1232, 1.442695
    %v1377 = vpow.pop %v1376
    %v1378 = vmul.f32 %v1233, 1.442695
    %v1379 = vpow.pop %v1378
    %v1380 = vmul.f32 %v1234, 1.442695
    %v1381 = vpow.pop %v1380
    %v1382 = vmul.f32 %v1235, 1.442695
    %v1383 = vpow.pop %v1382
    %v1384 = vmul.f32 %v1236, 1.442695
    %v1385 = vpow.pop %v1384
    %v1386 = vmul.f32 %v1237, 1.442695
    %v1387 = vpow.pop %v1386
    %v1388 = vmul.f32 %v1238, 1.442695
    %v1389 = vpow.pop %v1388
    %v1390 = vmul.f32 %v1239, 1.442695
    %v1391 = vpow.pop %v1390
    %v1392 = vmul.f32 %v1240, 1.442695
    %v1393 = vpow.pop %v1392
    %v1394 = vmul.f32 %v1241, 1.442695
    %v1395 = vpow.pop %v1394
    %v1396 = vmul.f32 %v1242, 1.442695
    %v1397 = vpow.pop %v1396
    %v1398 = vmul.f32 %v1243, 1.442695
    %v1399 = vpow.pop %v1398
    %v1400 = vmul.f32 %v1244, 1.442695
    %v1401 = vpow.pop %v1400
    %v1402 = vmul.f32 %v1245, 1.442695
    %v1403 = vpow.pop %v1402
    %v1404 = vmul.f32 %v1246, 1.442695
    %v1405 = vpow.pop %v1404
    %v1406 = vmul.f32 %v1247, 1.442695
    %v1407 = vpow.pop %v1406
    %v1408 = vmul.f32 %v1248, 1.442695
    %v1409 = vpow.pop %v1408
    %v1410 = vmul.f32 %v1249, 1.442695
    %v1411 = vpow.pop %v1410
    %v1412 = vmul.f32 %v1250, 1.442695
    %v1413 = vpow.pop %v1412
    %v1414 = vmul.f32 %v1251, 1.442695
    %v1415 = vpow.pop %v1414
    %v1416 = vmul.f32 %v1252, 1.442695
    %v1417 = vpow.pop %v1416
    %v1418 = vmul.f32 %v1253, 1.442695
    %v1419 = vpow.pop %v1418
    %v1420 = vmul.f32 %v1254, 1.442695
    %v1421 = vpow.pop %v1420
    %v1422 = vmul.f32 %v1255, 1.442695
    %v1423 = vpow.pop %v1422
    %v1424 = vmul.f32 %v1256, 1.442695
    %v1425 = vpow.pop %v1424
    %v1426 = vmul.f32 %v1257, 1.442695
    %v1427 = vpow.pop %v1426
    %v1428 = vmul.f32 %v1258, 1.442695
    %v1429 = vpow.pop %v1428
    %v1430 = vmul.f32 %v1259, 1.442695
    %v1431 = vpow.pop %v1430
    %v1432 = vmul.f32 %v1260, 1.442695
    %v1433 = vpow.pop %v1432
    %v1434 = vmul.f32 %v1261, 1.442695
    %v1435 = vpow.pop %v1434
    %v1436 = vmul.f32 %v1262, 1.442695
    %v1437 = vpow.pop %v1436
    %v1438 = vmul.f32 %v1263, 1.442695
    %v1439 = vpow.pop %v1438
    %v1440 = vmul.f32 %v1264, 1.442695
    %v1441 = vpow.pop %v1440
    %v1442 = vmul.f32 %v1265, 1.442695
    %v1443 = vpow.pop %v1442
    %v1444 = vmul.f32 %v1266, 1.442695
    %v1445 = vpow.pop %v1444
    %v1446 = vmul.f32 %v1267, 1.442695
    %v1447 = vpow.pop %v1446
    %v1448 = vmul.f32 %v1268, 1.442695
    %v1449 = vpow.pop %v1448
    %v1450 = vmul.f32 %v1269, 1.442695
    %v1451 = vpow.pop %v1450
    %v1452 = vmul.f32 %v1270, 1.442695
    %v1453 = vpow.pop %v1452
    %v1454 = vmul.f32 %v1271, 1.442695
    %v1455 = vpow.pop %v1454
    %v1456 = vmul.f32 %v1272, 1.442695
    %v1457 = vpow.pop %v1456
    %v1458 = vmul.f32 %v1273, 1.442695
    %v1459 = vpow.pop %v1458
    %v1460 = vmul.f32 %v1274, 1.442695
    %v1461 = vpow.pop %v1460
    %v1462 = vmul.f32 %v1275, 1.442695
    %v1463 = vpow.pop %v1462
    %v1464 = vmul.f32 %v1276, 1.442695
    %v1465 = vpow.pop %v1464
    %v1466 = vmul.f32 %v1277, 1.442695
    %v1467 = vpow.pop %v1466
    %v1468 = vmul.f32 %v1278, 1.442695
    %v1469 = vpow.pop %v1468
    %v1470 = vmul.f32 %v1279, 1.442695
    %v1471 = vpow.pop %v1470
    %v1472 = vadd.f32 %v1281, 1.0
    %v1473 = vadd.f32 %v1283, 1.0
    %v1474 = vadd.f32 %v1285, 1.0
    %v1475 = vadd.f32 %v1287, 1.0
    %v1476 = vadd.f32 %v1289, 1.0
    %v1477 = vadd.f32 %v1291, 1.0
    %v1478 = vadd.f32 %v1293, 1.0
    %v1479 = vadd.f32 %v1295, 1.0
    %v1480 = vadd.f32 %v1297, 1.0
    %v1481 = vadd.f32 %v1299, 1.0
    %v1482 = vadd.f32 %v1301, 1.0
    %v1483 = vadd.f32 %v1303, 1.0
    %v1484 = vadd.f32 %v1305, 1.0
    %v1485 = vadd.f32 %v1307, 1.0
    %v1486 = vadd.f32 %v1309, 1.0
    %v1487 = vadd.f32 %v1311, 1.0
    %v1488 = vadd.f32 %v1313, 1.0
    %v1489 = vadd.f32 %v1315, 1.0
    %v1490 = vadd.f32 %v1317, 1.0
    %v1491 = vadd.f32 %v1319, 1.0
    %v1492 = vadd.f32 %v1321, 1.0
    %v1493 = vadd.f32 %v1323, 1.0
    %v1494 = vadd.f32 %v1325, 1.0
    %v1495 = vadd.f32 %v1327, 1.0
    %v1496 = vadd.f32 %v1329, 1.0
    %v1497 = vadd.f32 %v1331, 1.0
    %v1498 = vadd.f32 %v1333, 1.0
    %v1499 = vadd.f32 %v1335, 1.0
    %v1500 = vadd.f32 %v1337, 1.0
    %v1501 = vadd.f32 %v1339, 1.0
    %v1502 = vadd.f32 %v1341, 1.0
    %v1503 = vadd.f32 %v1343, 1.0
    %v1504 = vadd.f32 %v1345, 1.0
    %v1505 = vadd.f32 %v1347, 1.0
    %v1506 = vadd.f32 %v1349, 1.0
    %v1507 = vadd.f32 %v1351, 1.0
    %v1508 = vadd.f32 %v1353, 1.0
    %v1509 = vadd.f32 %v1355, 1.0
    %v1510 = vadd.f32 %v1357, 1.0
    %v1511 = vadd.f32 %v1359, 1.0
    %v1512 = vadd.f32 %v1361, 1.0
    %v1513 = vadd.f32 %v1363, 1.0
    %v1514 = vadd.f32 %v1365, 1.0
    %v1515 = vadd.f32 %v1367, 1.0
    %v1516 = vadd.f32 %v1369, 1.0
    %v1517 = vadd.f32 %v1371, 1.0
    %v1518 = vadd.f32 %v1373, 1.0
    %v1519 = vadd.f32 %v1375, 1.0
    %v1520 = vadd.f32 %v1377, 1.0
    %v1521 = vadd.f32 %v1379, 1.0
    %v1522 = vadd.f32 %v1381, 1.0
    %v1523 = vadd.f32 %v1383, 1.0
    %v1524 = vadd.f32 %v1385, 1.0
    %v1525 = vadd.f32 %v1387, 1.0
    %v1526 = vadd.f32 %v1389, 1.0
    %v1527 = vadd.f32 %v1391, 1.0
    %v1528 = vadd.f32 %v1393, 1.0
    %v1529 = vadd.f32 %v1395, 1.0
    %v1530 = vadd.f32 %v1397, 1.0
    %v1531 = vadd.f32 %v1399, 1.0
    %v1532 = vadd.f32 %v1401, 1.0
    %v1533 = vadd.f32 %v1403, 1.0
    %v1534 = vadd.f32 %v1405, 1.0
    %v1535 = vadd.f32 %v1407, 1.0
    %v1536 = vadd.f32 %v1409, 1.0
    %v1537 = vadd.f32 %v1411, 1.0
    %v1538 = vadd.f32 %v1413, 1.0
    %v1539 = vadd.f32 %v1415, 1.0
    %v1540 = vadd.f32 %v1417, 1.0
    %v1541 = vadd.f32 %v1419, 1.0
    %v1542 = vadd.f32 %v1421, 1.0
    %v1543 = vadd.f32 %v1423, 1.0
    %v1544 = vadd.f32 %v1425, 1.0
    %v1545 = vadd.f32 %v1427, 1.0
    %v1546 = vadd.f32 %v1429, 1.0
    %v1547 = vadd.f32 %v1431, 1.0
    %v1548 = vadd.f32 %v1433, 1.0
    %v1549 = vadd.f32 %v1435, 1.0
    %v1550 = vadd.f32 %v1437, 1.0
    %v1551 = vadd.f32 %v1439, 1.0
    %v1552 = vadd.f32 %v1441, 1.0
    %v1553 = vadd.f32 %v1443, 1.0
    %v1554 = vadd.f32 %v1445, 1.0
    %v1555 = vadd.f32 %v1447, 1.0
    %v1556 = vadd.f32 %v1449, 1.0
    %v1557 = vadd.f32 %v1451, 1.0
    %v1558 = vadd.f32 %v1453, 1.0
    %v1559 = vadd.f32 %v1455, 1.0
    %v1560 = vadd.f32 %v1457, 1.0
    %v1561 = vadd.f32 %v1459, 1.0
    %v1562 = vadd.f32 %v1461, 1.0
    %v1563 = vadd.f32 %v1463, 1.0
    %v1564 = vadd.f32 %v1465, 1.0
    %v1565 = vadd.f32 %v1467, 1.0
    %v1566 = vadd.f32 %v1469, 1.0
    %v1567 = vadd.f32 %v1471, 1.0
    %v1568 = vrcp.pop %v1472
    %v1569 = vmul.f32 1.0, %v1568
    %v1570 = vrcp.pop %v1473
    %v1571 = vmul.f32 1.0, %v1570
    %v1572 = vrcp.pop %v1474
    %v1573 = vmul.f32 1.0, %v1572
    %v1574 = vrcp.pop %v1475
    %v1575 = vmul.f32 1.0, %v1574
    %v1576 = vrcp.pop %v1476
    %v1577 = vmul.f32 1.0, %v1576
    %v1578 = vrcp.pop %v1477
    %v1579 = vmul.f32 1.0, %v1578
    %v1580 = vrcp.pop %v1478
    %v1581 = vmul.f32 1.0, %v1580
    %v1582 = vrcp.pop %v1479
    %v1583 = vmul.f32 1.0, %v1582
    %v1584 = vrcp.pop %v1480
    %v1585 = vmul.f32 1.0, %v1584
    %v1586 = vrcp.pop %v1481
    %v1587 = vmul.f32 1.0, %v1586
    %v1588 = vrcp.pop %v1482
    %v1589 = vmul.f32 1.0, %v1588
    %v1590 = vrcp.pop %v1483
    %v1591 = vmul.f32 1.0, %v1590
    %v1592 = vrcp.pop %v1484
    %v1593 = vmul.f32 1.0, %v1592
    %v1594 = vrcp.pop %v1485
    %v1595 = vmul.f32 1.0, %v1594
    %v1596 = vrcp.pop %v1486
    %v1597 = vmul.f32 1.0, %v1596
    %v1598 = vrcp.pop %v1487
    %v1599 = vmul.f32 1.0, %v1598
    %v1600 = vrcp.pop %v1488
    %v1601 = vmul.f32 1.0, %v1600
    %v1602 = vrcp.pop %v1489
    %v1603 = vmul.f32 1.0, %v1602
    %v1604 = vrcp.pop %v1490
    %v1605 = vmul.f32 1.0, %v1604
    %v1606 = vrcp.pop %v1491
    %v1607 = vmul.f32 1.0, %v1606
    %v1608 = vrcp.pop %v1492
    %v1609 = vmul.f32 1.0, %v1608
    %v1610 = vrcp.pop %v1493
    %v1611 = vmul.f32 1.0, %v1610
    %v1612 = vrcp.pop %v1494
    %v1613 = vmul.f32 1.0, %v1612
    %v1614 = vrcp.pop %v1495
    %v1615 = vmul.f32 1.0, %v1614
    %v1616 = vrcp.pop %v1496
    %v1617 = vmul.f32 1.0, %v1616
    %v1618 = vrcp.pop %v1497
    %v1619 = vmul.f32 1.0, %v1618
    %v1620 = vrcp.pop %v1498
    %v1621 = vmul.f32 1.0, %v1620
    %v1622 = vrcp.pop %v1499
    %v1623 = vmul.f32 1.0, %v1622
    %v1624 = vrcp.pop %v1500
    %v1625 = vmul.f32 1.0, %v1624
    %v1626 = vrcp.pop %v1501
    %v1627 = vmul.f32 1.0, %v1626
    %v1628 = vrcp.pop %v1502
    %v1629 = vmul.f32 1.0, %v1628
    %v1630 = vrcp.pop %v1503
    %v1631 = vmul.f32 1.0, %v1630
    %v1632 = vrcp.pop %v1504
    %v1633 = vmul.f32 1.0, %v1632
    %v1634 = vrcp.pop %v1505
    %v1635 = vmul.f32 1.0, %v1634
    %v1636 = vrcp.pop %v1506
    %v1637 = vmul.f32 1.0, %v1636
    %v1638 = vrcp.pop %v1507
    %v1639 = vmul.f32 1.0, %v1638
    %v1640 = vrcp.pop %v1508
    %v1641 = vmul.f32 1.0, %v1640
    %v1642 = vrcp.pop %v1509
    %v1643 = vmul.f32 1.0, %v1642
    %v1644 = vrcp.pop %v1510
    %v1645 = vmul.f32 1.0, %v1644
    %v1646 = vrcp.pop %v1511
    %v1647 = vmul.f32 1.0, %v1646
    %v1648 = vrcp.pop %v1512
    %v1649 = vmul.f32 1.0, %v1648
    %v1650 = vrcp.pop %v1513
    %v1651 = vmul.f32 1.0, %v1650
    %v1652 = vrcp.pop %v1514
    %v1653 = vmul.f32 1.0, %v1652
    %v1654 = vrcp.pop %v1515
    %v1655 = vmul.f32 1.0, %v1654
    %v1656 = vrcp.pop %v1516
    %v1657 = vmul.f32 1.0, %v1656
    %v1658 = vrcp.pop %v1517
    %v1659 = vmul.f32 1.0, %v1658
    %v1660 = vrcp.pop %v1518
    %v1661 = vmul.f32 1.0, %v1660
    %v1662 = vrcp.pop %v1519
    %v1663 = vmul.f32 1.0, %v1662
    %v1664 = vrcp.pop %v1520
    %v1665 = vmul.f32 1.0, %v1664
    %v1666 = vrcp.pop %v1521
    %v1667 = vmul.f32 1.0, %v1666
    %v1668 = vrcp.pop %v1522
    %v1669 = vmul.f32 1.0, %v1668
    %v1670 = vrcp.pop %v1523
    %v1671 = vmul.f32 1.0, %v1670
    %v1672 = vrcp.pop %v1524
    %v1673 = vmul.f32 1.0, %v1672
    %v1674 = vrcp.pop %v1525
    %v1675 = vmul.f32 1.0, %v1674
    %v1676 = vrcp.pop %v1526
    %v1677 = vmul.f32 1.0, %v1676
    %v1678 = vrcp.pop %v1527
    %v1679 = vmul.f32 1.0, %v1678
    %v1680 = vrcp.pop %v1528
    %v1681 = vmul.f32 1.0, %v1680
    %v1682 = vrcp.pop %v1529
    %v1683 = vmul.f32 1.0, %v1682
    %v1684 = vrcp.pop %v1530
    %v1685 = vmul.f32 1.0, %v1684
    %v1686 = vrcp.pop %v1531
    %v1687 = vmul.f32 1.0, %v1686
    %v1688 = vrcp.pop %v1532
    %v1689 = vmul.f32 1.0, %v1688
    %v1690 = vrcp.pop %v1533
    %v1691 = vmul.f32 1.0, %v1690
    %v1692 = vrcp.pop %v1534
    %v1693 = vmul.f32 1.0, %v1692
    %v1694 = vrcp.pop %v1535
    %v1695 = vmul.f32 1.0, %v1694
    %v1696 = vrcp.pop %v1536
    %v1697 = vmul.f32 1.0, %v1696
    %v1698 = vrcp.pop %v1537
    %v1699 = vmul.f32 1.0, %v1698
    %v1700 = vrcp.pop %v1538
    %v1701 = vmul.f32 1.0, %v1700
    %v1702 = vrcp.pop %v1539
    %v1703 = vmul.f32 1.0, %v1702
    %v1704 = vrcp.pop %v1540
    %v1705 = vmul.f32 1.0, %v1704
    %v1706 = vrcp.pop %v1541
    %v1707 = vmul.f32 1.0, %v1706
    %v1708 = vrcp.pop %v1542
    %v1709 = vmul.f32 1.0, %v1708
    %v1710 = vrcp.pop %v1543
    %v1711 = vmul.f32 1.0, %v1710
    %v1712 = vrcp.pop %v1544
    %v1713 = vmul.f32 1.0, %v1712
    %v1714 = vrcp.pop %v1545
    %v1715 = vmul.f32 1.0, %v1714
    %v1716 = vrcp.pop %v1546
    %v1717 = vmul.f32 1.0, %v1716
    %v1718 = vrcp.pop %v1547
    %v1719 = vmul.f32 1.0, %v1718
    %v1720 = vrcp.pop %v1548
    %v1721 = vmul.f32 1.0, %v1720
    %v1722 = vrcp.pop %v1549
    %v1723 = vmul.f32 1.0, %v1722
    %v1724 = vrcp.pop %v1550
    %v1725 = vmul.f32 1.0, %v1724
    %v1726 = vrcp.pop %v1551
    %v1727 = vmul.f32 1.0, %v1726
    %v1728 = vrcp.pop %v1552
    %v1729 = vmul.f32 1.0, %v1728
    %v1730 = vrcp.pop %v1553
    %v1731 = vmul.f32 1.0, %v1730
    %v1732 = vrcp.pop %v1554
    %v1733 = vmul.f32 1.0, %v1732
    %v1734 = vrcp.pop %v1555
    %v1735 = vmul.f32 1.0, %v1734
    %v1736 = vrcp.pop %v1556
    %v1737 = vmul.f32 1.0, %v1736
    %v1738 = vrcp.pop %v1557
    %v1739 = vmul.f32 1.0, %v1738
    %v1740 = vrcp.pop %v1558
    %v1741 = vmul.f32 1.0, %v1740
    %v1742 = vrcp.pop %v1559
    %v1743 = vmul.f32 1.0, %v1742
    %v1744 = vrcp.pop %v1560
    %v1745 = vmul.f32 1.0, %v1744
    %v1746 = vrcp.pop %v1561
    %v1747 = vmul.f32 1.0, %v1746
    %v1748 = vrcp.pop %v1562
    %v1749 = vmul.f32 1.0, %v1748
    %v1750 = vrcp.pop %v1563
    %v1751 = vmul.f32 1.0, %v1750
    %v1752 = vrcp.pop %v1564
    %v1753 = vmul.f32 1.0, %v1752
    %v1754 = vrcp.pop %v1565
    %v1755 = vmul.f32 1.0, %v1754
    %v1756 = vrcp.pop %v1566
    %v1757 = vmul.f32 1.0, %v1756
    %v1758 = vrcp.pop %v1567
    %v1759 = vmul.f32 1.0, %v1758
    %v1760 = vmul.f32 %v1088, %v1569
    %v1761 = vmul.f32 %v1089, %v1571
    %v1762 = vmul.f32 %v1090, %v1573
    %v1763 = vmul.f32 %v1091, %v1575
    %v1764 = vmul.f32 %v1092, %v1577
    %v1765 = vmul.f32 %v1093, %v1579
    %v1766 = vmul.f32 %v1094, %v1581
    %v1767 = vmul.f32 %v1095, %v1583
    %v1768 = vmul.f32 %v1096, %v1585
    %v1769 = vmul.f32 %v1097, %v1587
    %v1770 = vmul.f32 %v1098, %v1589
    %v1771 = vmul.f32 %v1099, %v1591
    %v1772 = vmul.f32 %v1100, %v1593
    %v1773 = vmul.f32 %v1101, %v1595
    %v1774 = vmul.f32 %v1102, %v1597
    %v1775 = vmul.f32 %v1103, %v1599
    %v1776 = vmul.f32 %v1104, %v1601
    %v1777 = vmul.f32 %v1105, %v1603
    %v1778 = vmul.f32 %v1106, %v1605
    %v1779 = vmul.f32 %v1107, %v1607
    %v1780 = vmul.f32 %v1108, %v1609
    %v1781 = vmul.f32 %v1109, %v1611
    %v1782 = vmul.f32 %v1110, %v1613
    %v1783 = vmul.f32 %v1111, %v1615
    %v1784 = vmul.f32 %v1112, %v1617
    %v1785 = vmul.f32 %v1113, %v1619
    %v1786 = vmul.f32 %v1114, %v1621
    %v1787 = vmul.f32 %v1115, %v1623
    %v1788 = vmul.f32 %v1116, %v1625
    %v1789 = vmul.f32 %v1117, %v1627
    %v1790 = vmul.f32 %v1118, %v1629
    %v1791 = vmul.f32 %v1119, %v1631
    %v1792 = vmul.f32 %v1120, %v1633
    %v1793 = vmul.f32 %v1121, %v1635
    %v1794 = vmul.f32 %v1122, %v1637
    %v1795 = vmul.f32 %v1123, %v1639
    %v1796 = vmul.f32 %v1124, %v1641
    %v1797 = vmul.f32 %v1125, %v1643
    %v1798 = vmul.f32 %v1126, %v1645
    %v1799 = vmul.f32 %v1127, %v1647
    %v1800 = vmul.f32 %v1128, %v1649
    %v1801 = vmul.f32 %v1129, %v1651
    %v1802 = vmul.f32 %v1130, %v1653
    %v1803 = vmul.f32 %v1131, %v1655
    %v1804 = vmul.f32 %v1132, %v1657
    %v1805 = vmul.f32 %v1133, %v1659
    %v1806 = vmul.f32 %v1134, %v1661
    %v1807 = vmul.f32 %v1135, %v1663
    %v1808 = vmul.f32 %v1136, %v1665
    %v1809 = vmul.f32 %v1137, %v1667
    %v1810 = vmul.f32 %v1138, %v1669
    %v1811 = vmul.f32 %v1139, %v1671
    %v1812 = vmul.f32 %v1140, %v1673
    %v1813 = vmul.f32 %v1141, %v1675
    %v1814 = vmul.f32 %v1142, %v1677
    %v1815 = vmul.f32 %v1143, %v1679
    %v1816 = vmul.f32 %v1144, %v1681
    %v1817 = vmul.f32 %v1145, %v1683
    %v1818 = vmul.f32 %v1146, %v1685
    %v1819 = vmul.f32 %v1147, %v1687
    %v1820 = vmul.f32 %v1148, %v1689
    %v1821 = vmul.f32 %v1149, %v1691
    %v1822 = vmul.f32 %v1150, %v1693
    %v1823 = vmul.f32 %v1151, %v1695
    %v1824 = vmul.f32 %v1152, %v1697
    %v1825 = vmul.f32 %v1153, %v1699
    %v1826 = vmul.f32 %v1154, %v1701
    %v1827 = vmul.f32 %v1155, %v1703
    %v1828 = vmul.f32 %v1156, %v1705
    %v1829 = vmul.f32 %v1157, %v1707
    %v1830 = vmul.f32 %v1158, %v1709
    %v1831 = vmul.f32 %v1159, %v1711
    %v1832 = vmul.f32 %v1160, %v1713
    %v1833 = vmul.f32 %v1161, %v1715
    %v1834 = vmul.f32 %v1162, %v1717
    %v1835 = vmul.f32 %v1163, %v1719
    %v1836 = vmul.f32 %v1164, %v1721
    %v1837 = vmul.f32 %v1165, %v1723
    %v1838 = vmul.f32 %v1166, %v1725
    %v1839 = vmul.f32 %v1167, %v1727
    %v1840 = vmul.f32 %v1168, %v1729
    %v1841 = vmul.f32 %v1169, %v1731
    %v1842 = vmul.f32 %v1170, %v1733
    %v1843 = vmul.f32 %v1171, %v1735
    %v1844 = vmul.f32 %v1172, %v1737
    %v1845 = vmul.f32 %v1173, %v1739
    %v1846 = vmul.f32 %v1174, %v1741
    %v1847 = vmul.f32 %v1175, %v1743
    %v1848 = vmul.f32 %v1176, %v1745
    %v1849 = vmul.f32 %v1177, %v1747
    %v1850 = vmul.f32 %v1178, %v1749
    %v1851 = vmul.f32 %v1179, %v1751
    %v1852 = vmul.f32 %v1180, %v1753
    %v1853 = vmul.f32 %v1181, %v1755
    %v1854 = vmul.f32 %v1182, %v1757
    %v1855 = vmul.f32 %v1183, %v1759
    %v1856 = vld [vmem:[#allocation2] sm:$0xff]
    %v1857 = vld [vmem:[#allocation2 + $0x8] sm:$0xff]
    %v1858 = vld [vmem:[#allocation2 + $0x10] sm:$0xff]
    %v1859 = vld [vmem:[#allocation2 + $0x18] sm:$0xff]
    %v1860 = vld [vmem:[#allocation2 + $0x20] sm:$0xff]
    %v1861 = vld [vmem:[#allocation2 + $0x28] sm:$0xff]
    %v1862 = vld [vmem:[#allocation2 + $0x30] sm:$0xff]
    %v1863 = vld [vmem:[#allocation2 + $0x38] sm:$0xff]
    %v1864 = vld [vmem:[#allocation2 + $0x40] sm:$0xff]
    %v1865 = vld [vmem:[#allocation2 + $0x48] sm:$0xff]
    %v1866 = vld [vmem:[#allocation2 + $0x50] sm:$0xff]
    %v1867 = vld [vmem:[#allocation2 + $0x58] sm:$0xff]
    %v1868 = vld [vmem:[#allocation2 + $0x60] sm:$0xff]
    %v1869 = vld [vmem:[#allocation2 + $0x68] sm:$0xff]
    %v1870 = vld [vmem:[#allocation2 + $0x70] sm:$0xff]
    %v1871 = vld [vmem:[#allocation2 + $0x78] sm:$0xff]
    %v1872 = vld [vmem:[#allocation2 + $0x80] sm:$0xff]
    %v1873 = vld [vmem:[#allocation2 + $0x88] sm:$0xff]
    %v1874 = vld [vmem:[#allocation2 + $0x90] sm:$0xff]
    %v1875 = vld [vmem:[#allocation2 + $0x98] sm:$0xff]
    %v1876 = vld [vmem:[#allocation2 + $0xa0] sm:$0xff]
    %v1877 = vld [vmem:[#allocation2 + $0xa8] sm:$0xff]
    %v1878 = vld [vmem:[#allocation2 + $0xb0] sm:$0xff]
    %v1879 = vld [vmem:[#allocation2 + $0xb8] sm:$0xff]
    %v1880 = vld [vmem:[#allocation2 + $0xc0] sm:$0xff]
    %v1881 = vld [vmem:[#allocation2 + $0xc8] sm:$0xff]
    %v1882 = vld [vmem:[#allocation2 + $0xd0] sm:$0xff]
    %v1883 = vld [vmem:[#allocation2 + $0xd8] sm:$0xff]
    %v1884 = vld [vmem:[#allocation2 + $0xe0] sm:$0xff]
    %v1885 = vld [vmem:[#allocation2 + $0xe8] sm:$0xff]
    %v1886 = vld [vmem:[#allocation2 + $0xf0] sm:$0xff]
    %v1887 = vld [vmem:[#allocation2 + $0xf8] sm:$0xff]
    %v1888 = vpack.c.bf16 %v1763, %v1760
    %v1889 = vpack.c.bf16 %v1764, %v1761
    %v1890 = vpack.c.bf16 %v1765, %v1762
    %v1891 = vpack.c.bf16 %v1769, %v1766
    %v1892 = vpack.c.bf16 %v1770, %v1767
    %v1893 = vpack.c.bf16 %v1771, %v1768
    %v1894 = vpack.c.bf16 %v1775, %v1772
    %v1895 = vpack.c.bf16 %v1776, %v1773
    %v1896 = vpack.c.bf16 %v1777, %v1774
    %v1897 = vpack.c.bf16 %v1781, %v1778
    %v1898 = vpack.c.bf16 %v1782, %v1779
    %v1899 = vpack.c.bf16 %v1783, %v1780
    %v1900 = vpack.c.bf16 %v1787, %v1784
    %v1901 = vpack.c.bf16 %v1788, %v1785
    %v1902 = vpack.c.bf16 %v1789, %v1786
    %v1903 = vpack.c.bf16 %v1793, %v1790
    %v1904 = vpack.c.bf16 %v1794, %v1791
    %v1905 = vpack.c.bf16 %v1795, %v1792
    %v1906 = vpack.c.bf16 %v1799, %v1796
    %v1907 = vpack.c.bf16 %v1800, %v1797
    %v1908 = vpack.c.bf16 %v1801, %v1798
    %v1909 = vpack.c.bf16 %v1805, %v1802
    %v1910 = vpack.c.bf16 %v1806, %v1803
    %v1911 = vpack.c.bf16 %v1807, %v1804
    %v1912 = vpack.c.bf16 %v1811, %v1808
    %v1913 = vpack.c.bf16 %v1812, %v1809
    %v1914 = vpack.c.bf16 %v1813, %v1810
    %v1915 = vpack.c.bf16 %v1817, %v1814
    %v1916 = vpack.c.bf16 %v1818, %v1815
    %v1917 = vpack.c.bf16 %v1819, %v1816
    %v1918 = vpack.c.bf16 %v1823, %v1820
    %v1919 = vpack.c.bf16 %v1824, %v1821
    %v1920 = vpack.c.bf16 %v1825, %v1822
    %v1921 = vpack.c.bf16 %v1829, %v1826
    %v1922 = vpack.c.bf16 %v1830, %v1827
    %v1923 = vpack.c.bf16 %v1831, %v1828
    %v1924 = vpack.c.bf16 %v1835, %v1832
    %v1925 = vpack.c.bf16 %v1836, %v1833
    %v1926 = vpack.c.bf16 %v1837, %v1834
    %v1927 = vpack.c.bf16 %v1841, %v1838
    %v1928 = vpack.c.bf16 %v1842, %v1839
    %v1929 = vpack.c.bf16 %v1843, %v1840
    %v1930 = vpack.c.bf16 %v1847, %v1844
    %v1931 = vpack.c.bf16 %v1848, %v1845
    %v1932 = vpack.c.bf16 %v1849, %v1846
    %v1933 = vpack.c.bf16 %v1853, %v1850
    %v1934 = vpack.c.bf16 %v1854, %v1851
    %v1935 = vpack.c.bf16 %v1855, %v1852
    %v1936 = vld [vmem:[#allocation8] sm:$0xf]
    %v1937 = vld [vmem:[#allocation8 + $0x4] sm:$0xf]
    %v1938 = vld [vmem:[#allocation8 + $0x8] sm:$0xf]
    %v1939 = vld [vmem:[#allocation8 + $0xc] sm:$0xf]
    %v1940 = vld [vmem:[#allocation8 + $0x10] sm:$0xf]
    %v1941 = vld [vmem:[#allocation8 + $0x14] sm:$0xf]
    %v1942 = vld [vmem:[#allocation8 + $0x18] sm:$0xf]
    %v1943 = vld [vmem:[#allocation8 + $0x1c] sm:$0xf]
    %v1944 = vld [vmem:[#allocation8 + $0x20] sm:$0xf]
    %v1945 = vld [vmem:[#allocation8 + $0x24] sm:$0xf]
    %v1946 = vld [vmem:[#allocation8 + $0x28] sm:$0xf]
    %v1947 = vld [vmem:[#allocation8 + $0x2c] sm:$0xf]
    %v1948 = vld [vmem:[#allocation8 + $0x30] sm:$0xf]
    %v1949 = vld [vmem:[#allocation8 + $0x34] sm:$0xf]
    %v1950 = vld [vmem:[#allocation8 + $0x38] sm:$0xf]
    %v1951 = vld [vmem:[#allocation8 + $0x3c] sm:$0xf]
    %v1952 = vld [vmem:[#allocation8 + $0x40] sm:$0xf]
    %v1953 = vld [vmem:[#allocation8 + $0x44] sm:$0xf]
    %v1954 = vld [vmem:[#allocation8 + $0x48] sm:$0xf]
    %v1955 = vld [vmem:[#allocation8 + $0x4c] sm:$0xf]
    %v1956 = vld [vmem:[#allocation8 + $0x50] sm:$0xf]
    %v1957 = vld [vmem:[#allocation8 + $0x54] sm:$0xf]
    %v1958 = vld [vmem:[#allocation8 + $0x58] sm:$0xf]
    %v1959 = vld [vmem:[#allocation8 + $0x5c] sm:$0xf]
    %v1960 = vld [vmem:[#allocation8 + $0x60] sm:$0xf]
    %v1961 = vld [vmem:[#allocation8 + $0x64] sm:$0xf]
    %v1962 = vld [vmem:[#allocation8 + $0x68] sm:$0xf]
    %v1963 = vld [vmem:[#allocation8 + $0x6c] sm:$0xf]
    %v1964 = vld [vmem:[#allocation8 + $0x70] sm:$0xf]
    %v1965 = vld [vmem:[#allocation8 + $0x74] sm:$0xf]
    %v1966 = vld [vmem:[#allocation8 + $0x78] sm:$0xf]
    %v1967 = vld [vmem:[#allocation8 + $0x7c] sm:$0xf]
    %v1968 = vld [vmem:[#allocation8 + $0x80] sm:$0xf]
    %v1969 = vld [vmem:[#allocation8 + $0x84] sm:$0xf]
    %v1970 = vld [vmem:[#allocation8 + $0x88] sm:$0xf]
    %v1971 = vld [vmem:[#allocation8 + $0x8c] sm:$0xf]
    %v1972 = vld [vmem:[#allocation8 + $0x90] sm:$0xf]
    %v1973 = vld [vmem:[#allocation8 + $0x94] sm:$0xf]
    %v1974 = vld [vmem:[#allocation8 + $0x98] sm:$0xf]
    %v1975 = vld [vmem:[#allocation8 + $0x9c] sm:$0xf]
    %v1976 = vld [vmem:[#allocation8 + $0xa0] sm:$0xf]
    %v1977 = vld [vmem:[#allocation8 + $0xa4] sm:$0xf]
    %v1978 = vld [vmem:[#allocation8 + $0xa8] sm:$0xf]
    %v1979 = vld [vmem:[#allocation8 + $0xac] sm:$0xf]
    %v1980 = vld [vmem:[#allocation8 + $0xb0] sm:$0xf]
    %v1981 = vld [vmem:[#allocation8 + $0xb4] sm:$0xf]
    %v1982 = vld [vmem:[#allocation8 + $0xb8] sm:$0xf]
    %v1983 = vld [vmem:[#allocation8 + $0xbc] sm:$0xf]
    %v2032 = vunpack.c.l.b16 %v1936
    %v2033 = vunpack.c.l.b16 %v1937
    %v2034 = vunpack.c.l.b16 %v1938
    %v2035 = vunpack.c.l.b16 %v1939
    %v2036 = vunpack.c.l.b16 %v1940
    %v2037 = vunpack.c.l.b16 %v1941
    %v2038 = vunpack.c.l.b16 %v1942
    %v2039 = vunpack.c.l.b16 %v1943
    %v2040 = vunpack.c.l.b16 %v1944
    %v2041 = vunpack.c.l.b16 %v1945
    %v2042 = vunpack.c.l.b16 %v1946
    %v2043 = vunpack.c.l.b16 %v1947
    %v2044 = vunpack.c.l.b16 %v1948
    %v2045 = vunpack.c.l.b16 %v1949
    %v2046 = vunpack.c.l.b16 %v1950
    %v2047 = vunpack.c.l.b16 %v1951
    %v2048 = vunpack.c.l.b16 %v1952
    %v2049 = vunpack.c.l.b16 %v1953
    %v2050 = vunpack.c.l.b16 %v1954
    %v2051 = vunpack.c.l.b16 %v1955
    %v2052 = vunpack.c.l.b16 %v1956
    %v2053 = vunpack.c.l.b16 %v1957
    %v2054 = vunpack.c.l.b16 %v1958
    %v2055 = vunpack.c.l.b16 %v1959
    %v2056 = vunpack.c.l.b16 %v1960
    %v2057 = vunpack.c.l.b16 %v1961
    %v2058 = vunpack.c.l.b16 %v1962
    %v2059 = vunpack.c.l.b16 %v1963
    %v2060 = vunpack.c.l.b16 %v1964
    %v2061 = vunpack.c.l.b16 %v1965
    %v2062 = vunpack.c.l.b16 %v1966
    %v2063 = vunpack.c.l.b16 %v1967
    %v2064 = vunpack.c.l.b16 %v1968
    %v2065 = vunpack.c.l.b16 %v1969
    %v2066 = vunpack.c.l.b16 %v1970
    %v2067 = vunpack.c.l.b16 %v1971
    %v2068 = vunpack.c.l.b16 %v1972
    %v2069 = vunpack.c.l.b16 %v1973
    %v2070 = vunpack.c.l.b16 %v1974
    %v2071 = vunpack.c.l.b16 %v1975
    %v2072 = vunpack.c.l.b16 %v1976
    %v2073 = vunpack.c.l.b16 %v1977
    %v2074 = vunpack.c.l.b16 %v1978
    %v2075 = vunpack.c.l.b16 %v1979
    %v2076 = vunpack.c.l.b16 %v1980
    %v2077 = vunpack.c.l.b16 %v1981
    %v2078 = vunpack.c.l.b16 %v1982
    %v2079 = vunpack.c.l.b16 %v1983
    %v2080 = vpack.c.b16 %v2033, %v2032
    %v2081 = vpack.c.b16 %v2035, %v2034
    %v2082 = vpack.c.b16 %v2037, %v2036
    %v2083 = vpack.c.b16 %v2039, %v2038
    %v2084 = vpack.c.b16 %v2041, %v2040
    %v2085 = vpack.c.b16 %v2043, %v2042
    %v2086 = vpack.c.b16 %v2045, %v2044
    %v2087 = vpack.c.b16 %v2047, %v2046
    %v2088 = vpack.c.b16 %v2049, %v2048
    %v2089 = vpack.c.b16 %v2051, %v2050
    %v2090 = vpack.c.b16 %v2053, %v2052
    %v2091 = vpack.c.b16 %v2055, %v2054
    %v2092 = vpack.c.b16 %v2057, %v2056
    %v2093 = vpack.c.b16 %v2059, %v2058
    %v2094 = vpack.c.b16 %v2061, %v2060
    %v2095 = vpack.c.b16 %v2063, %v2062
    %v2096 = vpack.c.b16 %v2065, %v2064
    %v2097 = vpack.c.b16 %v2067, %v2066
    %v2098 = vpack.c.b16 %v2069, %v2068
    %v2099 = vpack.c.b16 %v2071, %v2070
    %v2100 = vpack.c.b16 %v2073, %v2072
    %v2101 = vpack.c.b16 %v2075, %v2074
    %v2102 = vpack.c.b16 %v2077, %v2076
    %v2103 = vpack.c.b16 %v2079, %v2078
    %2128 = vmatprep.subr.bf16.mxu0 0
    %2129 = vmatpush1.bf16.msra.mxu0 %v2080
    %2130 = vmatprep.subr.bf16.mxu0 0
    %2131 = vmatpush1.bf16.msra.mxu0 %v2081
    %2132 = vmatprep.subr.bf16.mxu0 0
    %2133 = vmatpush1.bf16.msra.mxu0 %v2082
    %2134 = vmatprep.subr.bf16.mxu0 0
    %2135 = vmatpush1.bf16.msra.mxu0 %v2083
    %2136 = vmatprep.subr.bf16.mxu0 0
    %2137 = vmatpush1.bf16.msra.mxu0 %v2084
    %2138 = vmatprep.subr.bf16.mxu0 0
    %2139 = vmatpush1.bf16.msra.mxu0 %v2085
    %2140 = vmatprep.subr.bf16.mxu0 0
    %2141 = vmatpush1.bf16.msra.mxu0 %v2086
    %2142 = vmatprep.subr.bf16.mxu0 0
    %2143 = vmatpush1.bf16.msra.mxu0 %v2087
    %2144 = vmatprep.subr.bf16.mxu0 0
    %2145 = vmatpush1.bf16.msra.mxu0 %v2088
    %2146 = vmatprep.subr.bf16.mxu0 0
    %2147 = vmatpush1.bf16.msra.mxu0 %v2089
    %2148 = vmatprep.subr.bf16.mxu0 0
    %2149 = vmatpush1.bf16.msra.mxu0 %v2090
    %2150 = vmatprep.subr.bf16.mxu0 0
    %2151 = vmatpush1.bf16.msra.mxu0 %v2091
    %2152 = vmatprep.subr.bf16.mxu0 0
    %2153 = vmatpush1.bf16.msra.mxu0 %v2092
    %2154 = vmatprep.subr.bf16.mxu0 0
    %2155 = vmatpush1.bf16.msra.mxu0 %v2093
    %2156 = vmatprep.subr.bf16.mxu0 0
    %2157 = vmatpush1.bf16.msra.mxu0 %v2094
    %2158 = vmatprep.subr.bf16.mxu0 0
    %2159 = vmatpush1.bf16.msra.mxu0 %v2095
    %2160 = vmatprep.mubr.bf16.mxu0 %v1889
    %2161 = vmatmul.mubr.bf16.gmra.mrb[0].mxu0 %v1888
    %v2162 = vpop.f32.mrb[0].mxu0
    %v2163 = vadd.f32 0.0, %v2162
    %v2164 = vpop.f32.mrb[0].mxu0
    %v2165 = vpop.f32.mrb[0].mxu0
    %v2166 = vadd.f32 0.0, %v2165
    %v2167 = vpop.f32.mrb[0].mxu0
    %2168 = vmatprep.mubr.bf16.mxu0 %v1892
    %2169 = vmatmul.mubr.bf16.gmra.mrb[0].mxu0 %v1891
    %v2170 = vpop.f32.mrb[0].mxu0
    %v2171 = vadd.f32 0.0, %v2170
    %v2172 = vpop.f32.mrb[0].mxu0
    %v2173 = vpop.f32.mrb[0].mxu0
    %v2174 = vadd.f32 0.0, %v2173
    %v2175 = vpop.f32.mrb[0].mxu0
    %2176 = vmatprep.mubr.bf16.mxu0 %v1895
    %2177 = vmatmul.mubr.bf16.gmra.mrb[0].mxu0 %v1894
    %v2178 = vpop.f32.mrb[0].mxu0
    %v2179 = vadd.f32 0.0, %v2178
    %v2180 = vpop.f32.mrb[0].mxu0
    %v2181 = vpop.f32.mrb[0].mxu0
    %v2182 = vadd.f32 0.0, %v2181
    %v2183 = vpop.f32.mrb[0].mxu0
    %2184 = vmatprep.mubr.bf16.mxu0 %v1898
    %2185 = vmatmul.mubr.bf16.gmra.mrb[0].mxu0 %v1897
    %v2186 = vpop.f32.mrb[0].mxu0
    %v2187 = vadd.f32 0.0, %v2186
    %v2188 = vpop.f32.mrb[0].mxu0
    %v2189 = vpop.f32.mrb[0].mxu0
    %v2190 = vadd.f32 0.0, %v2189
    %v2191 = vpop.f32.mrb[0].mxu0
    %2192 = vmatprep.mubr.bf16.mxu0 %v1901
    %2193 = vmatmul.mubr.bf16.gmra.mrb[0].mxu0 %v1900
    %v2194 = vpop.f32.mrb[0].mxu0
    %v2195 = vadd.f32 0.0, %v2194
    %v2196 = vpop.f32.mrb[0].mxu0
    %v2197 = vpop.f32.mrb[0].mxu0
    %v2198 = vadd.f32 0.0, %v2197
    %v2199 = vpop.f32.mrb[0].mxu0
    %2200 = vmatprep.mubr.bf16.mxu0 %v1904
    %2201 = vmatmul.mubr.bf16.gmra.mrb[0].mxu0 %v1903
    %v2202 = vpop.f32.mrb[0].mxu0
    %v2203 = vadd.f32 0.0, %v2202
    %v2204 = vpop.f32.mrb[0].mxu0
    %v2205 = vpop.f32.mrb[0].mxu0
    %v2206 = vadd.f32 0.0, %v2205
    %v2207 = vpop.f32.mrb[0].mxu0
    %2208 = vmatprep.mubr.bf16.mxu0 %v1907
    %2209 = vmatmul.mubr.bf16.gmra.mrb[0].mxu0 %v1906
    %v2210 = vpop.f32.mrb[0].mxu0
    %v2211 = vadd.f32 0.0, %v2210
    %v2212 = vpop.f32.mrb[0].mxu0
    %v2213 = vpop.f32.mrb[0].mxu0
    %v2214 = vadd.f32 0.0, %v2213
    %v2215 = vpop.f32.mrb[0].mxu0
    %2216 = vmatprep.mubr.bf16.mxu0 %v1910
    %2217 = vmatmul.mubr.bf16.gmra.mrb[0].mxu0 %v1909
    %v2218 = vpop.f32.mrb[0].mxu0
    %v2219 = vadd.f32 0.0, %v2218
    %v2220 = vpop.f32.mrb[0].mxu0
    %v2221 = vpop.f32.mrb[0].mxu0
    %v2222 = vadd.f32 0.0, %v2221
    %v2223 = vpop.f32.mrb[0].mxu0
    %2224 = vmatprep.mubr.bf16.mxu0 %v1913
    %2225 = vmatmul.mubr.bf16.gmra.mrb[0].mxu0 %v1912
    %v2226 = vpop.f32.mrb[0].mxu0
    %v2227 = vadd.f32 0.0, %v2226
    %v2228 = vpop.f32.mrb[0].mxu0
    %v2229 = vpop.f32.mrb[0].mxu0
    %v2230 = vadd.f32 0.0, %v2229
    %v2231 = vpop.f32.mrb[0].mxu0
    %2232 = vmatprep.mubr.bf16.mxu0 %v1916
    %2233 = vmatmul.mubr.bf16.gmra.mrb[0].mxu0 %v1915
    %v2234 = vpop.f32.mrb[0].mxu0
    %v2235 = vadd.f32 0.0, %v2234
    %v2236 = vpop.f32.mrb[0].mxu0
    %v2237 = vpop.f32.mrb[0].mxu0
    %v2238 = vadd.f32 0.0, %v2237
    %v2239 = vpop.f32.mrb[0].mxu0
    %2240 = vmatprep.mubr.bf16.mxu0 %v1919
    %2241 = vmatmul.mubr.bf16.gmra.mrb[0].mxu0 %v1918
    %v2242 = vpop.f32.mrb[0].mxu0
    %v2243 = vadd.f32 0.0, %v2242
    %v2244 = vpop.f32.mrb[0].mxu0
    %v2245 = vpop.f32.mrb[0].mxu0
    %v2246 = vadd.f32 0.0, %v2245
    %v2247 = vpop.f32.mrb[0].mxu0
    %2248 = vmatprep.mubr.bf16.mxu0 %v1922
    %2249 = vmatmul.mubr.bf16.gmra.mrb[0].mxu0 %v1921
    %v2250 = vpop.f32.mrb[0].mxu0
    %v2251 = vadd.f32 0.0, %v2250
    %v2252 = vpop.f32.mrb[0].mxu0
    %v2253 = vpop.f32.mrb[0].mxu0
    %v2254 = vadd.f32 0.0, %v2253
    %v2255 = vpop.f32.mrb[0].mxu0
    %2256 = vmatprep.mubr.bf16.mxu0 %v1925
    %2257 = vmatmul.mubr.bf16.gmra.mrb[0].mxu0 %v1924
    %v2258 = vpop.f32.mrb[0].mxu0
    %v2259 = vadd.f32 0.0, %v2258
    %v2260 = vpop.f32.mrb[0].mxu0
    %v2261 = vpop.f32.mrb[0].mxu0
    %v2262 = vadd.f32 0.0, %v2261
    %v2263 = vpop.f32.mrb[0].mxu0
    %2264 = vmatprep.mubr.bf16.mxu0 %v1928
    %2265 = vmatmul.mubr.bf16.gmra.mrb[0].mxu0 %v1927
    %v2266 = vpop.f32.mrb[0].mxu0
    %v2267 = vadd.f32 0.0, %v2266
    %v2268 = vpop.f32.mrb[0].mxu0
    %v2269 = vpop.f32.mrb[0].mxu0
    %v2270 = vadd.f32 0.0, %v2269
    %v2271 = vpop.f32.mrb[0].mxu0
    %2272 = vmatprep.mubr.bf16.mxu0 %v1931
    %2273 = vmatmul.mubr.bf16.gmra.mrb[0].mxu0 %v1930
    %v2274 = vpop.f32.mrb[0].mxu0
    %v2275 = vadd.f32 0.0, %v2274
    %v2276 = vpop.f32.mrb[0].mxu0
    %v2277 = vpop.f32.mrb[0].mxu0
    %v2278 = vadd.f32 0.0, %v2277
    %v2279 = vpop.f32.mrb[0].mxu0
    %2280 = vmatprep.mubr.bf16.mxu0 %v1934
    %2281 = vmatmul.mubr.bf16.gmra.mrb[0].mxu0 %v1933
    %v2282 = vpop.f32.mrb[0].mxu0
    %v2283 = vadd.f32 0.0, %v2282
    %v2284 = vpop.f32.mrb[0].mxu0
    %v2285 = vpop.f32.mrb[0].mxu0
    %v2286 = vadd.f32 0.0, %v2285
    %v2287 = vpop.f32.mrb[0].mxu0
    %2288 = vdwg.mxu0
    %2289 = vmatprep.subr.bf16.mxu0 0
    %2290 = vmatpush1.bf16.msra.mxu0 %v2096
    %2291 = vmatprep.subr.bf16.mxu0 0
    %2292 = vmatpush1.bf16.msra.mxu0 %v2097
    %2293 = vmatprep.subr.bf16.mxu0 0
    %2294 = vmatpush1.bf16.msra.mxu0 %v2098
    %2295 = vmatprep.subr.bf16.mxu0 0
    %2296 = vmatpush1.bf16.msra.mxu0 %v2099
    %2297 = vmatprep.subr.bf16.mxu0 0
    %2298 = vmatpush1.bf16.msra.mxu0 %v2100
    %2299 = vmatprep.subr.bf16.mxu0 0
    %2300 = vmatpush1.bf16.msra.mxu0 %v2101
    %2301 = vmatprep.subr.bf16.mxu0 0
    %2302 = vmatpush1.bf16.msra.mxu0 %v2102
    %2303 = vmatprep.subr.bf16.mxu0 0
    %2304 = vmatpush1.bf16.msra.mxu0 %v2103
    %2305 = vmatprep.subr.bf16.mxu0 0
    %2306 = vmatpush1.bf16.msra.mxu0 0
    %2307 = vmatprep.subr.bf16.mxu0 0
    %2308 = vmatpush1.bf16.msra.mxu0 0
    %2309 = vmatprep.subr.bf16.mxu0 0
    %2310 = vmatpush1.bf16.msra.mxu0 0
    %2311 = vmatprep.subr.bf16.mxu0 0
    %2312 = vmatpush1.bf16.msra.mxu0 0
    %2313 = vmatprep.subr.bf16.mxu0 0
    %2314 = vmatpush1.bf16.msra.mxu0 0
    %2315 = vmatprep.subr.bf16.mxu0 0
    %2316 = vmatpush1.bf16.msra.mxu0 0
    %2317 = vmatprep.subr.bf16.mxu0 0
    %2318 = vmatpush1.bf16.msra.mxu0 0
    %2319 = vmatprep.subr.bf16.mxu0 0
    %2320 = vmatpush1.bf16.msra.mxu0 0
    %2321 = vmatprep.mubr.bf16.mxu0 0
    %2322 = vmatmul.mubr.bf16.gmra.mrb[0].mxu0 %v1890
    %v2323 = vpop.f32.mrb[0].mxu0
    %v2324 = vadd.f32 %v2163, %v2323
    %v2325 = vpop.f32.mrb[0].mxu0
    %v2326 = vpop.f32.mrb[0].mxu0
    %v2327 = vadd.f32 %v2166, %v2326
    %v2328 = vpop.f32.mrb[0].mxu0
    %2329 = vmatprep.mubr.bf16.mxu0 0
    %2330 = vmatmul.mubr.bf16.gmra.mrb[0].mxu0 %v1893
    %v2331 = vpop.f32.mrb[0].mxu0
    %v2332 = vadd.f32 %v2171, %v2331
    %v2333 = vpop.f32.mrb[0].mxu0
    %v2334 = vpop.f32.mrb[0].mxu0
    %v2335 = vadd.f32 %v2174, %v2334
    %v2336 = vpop.f32.mrb[0].mxu0
    %2337 = vmatprep.mubr.bf16.mxu0 0
    %2338 = vmatmul.mubr.bf16.gmra.mrb[0].mxu0 %v1896
    %v2339 = vpop.f32.mrb[0].mxu0
    %v2340 = vadd.f32 %v2179, %v2339
    %v2341 = vpop.f32.mrb[0].mxu0
    %v2342 = vpop.f32.mrb[0].mxu0
    %v2343 = vadd.f32 %v2182, %v2342
    %v2344 = vpop.f32.mrb[0].mxu0
    %2345 = vmatprep.mubr.bf16.mxu0 0
    %2346 = vmatmul.mubr.bf16.gmra.mrb[0].mxu0 %v1899
    %v2347 = vpop.f32.mrb[0].mxu0
    %v2348 = vadd.f32 %v2187, %v2347
    %v2349 = vpop.f32.mrb[0].mxu0
    %v2350 = vpop.f32.mrb[0].mxu0
    %v2351 = vadd.f32 %v2190, %v2350
    %v2352 = vpop.f32.mrb[0].mxu0
    %2353 = vmatprep.mubr.bf16.mxu0 0
    %2354 = vmatmul.mubr.bf16.gmra.mrb[0].mxu0 %v1902
    %v2355 = vpop.f32.mrb[0].mxu0
    %v2356 = vadd.f32 %v2195, %v2355
    %v2357 = vpop.f32.mrb[0].mxu0
    %v2358 = vpop.f32.mrb[0].mxu0
    %v2359 = vadd.f32 %v2198, %v2358
    %v2360 = vpop.f32.mrb[0].mxu0
    %2361 = vmatprep.mubr.bf16.mxu0 0
    %2362 = vmatmul.mubr.bf16.gmra.mrb[0].mxu0 %v1905
    %v2363 = vpop.f32.mrb[0].mxu0
    %v2364 = vadd.f32 %v2203, %v2363
    %v2365 = vpop.f32.mrb[0].mxu0
    %v2366 = vpop.f32.mrb[0].mxu0
    %v2367 = vadd.f32 %v2206, %v2366
    %v2368 = vpop.f32.mrb[0].mxu0
    %2369 = vmatprep.mubr.bf16.mxu0 0
    %2370 = vmatmul.mubr.bf16.gmra.mrb[0].mxu0 %v1908
    %v2371 = vpop.f32.mrb[0].mxu0
    %v2372 = vadd.f32 %v2211, %v2371
    %v2373 = vpop.f32.mrb[0].mxu0
    %v2374 = vpop.f32.mrb[0].mxu0
    %v2375 = vadd.f32 %v2214, %v2374
    %v2376 = vpop.f32.mrb[0].mxu0
    %2377 = vmatprep.mubr.bf16.mxu0 0
    %2378 = vmatmul.mubr.bf16.gmra.mrb[0].mxu0 %v1911
    %v2379 = vpop.f32.mrb[0].mxu0
    %v2380 = vadd.f32 %v2219, %v2379
    %v2381 = vpop.f32.mrb[0].mxu0
    %v2382 = vpop.f32.mrb[0].mxu0
    %v2383 = vadd.f32 %v2222, %v2382
    %v2384 = vpop.f32.mrb[0].mxu0
    %2385 = vmatprep.mubr.bf16.mxu0 0
    %2386 = vmatmul.mubr.bf16.gmra.mrb[0].mxu0 %v1914
    %v2387 = vpop.f32.mrb[0].mxu0
    %v2388 = vadd.f32 %v2227, %v2387
    %v2389 = vpop.f32.mrb[0].mxu0
    %v2390 = vpop.f32.mrb[0].mxu0
    %v2391 = vadd.f32 %v2230, %v2390
    %v2392 = vpop.f32.mrb[0].mxu0
    %2393 = vmatprep.mubr.bf16.mxu0 0
    %2394 = vmatmul.mubr.bf16.gmra.mrb[0].mxu0 %v1917
    %v2395 = vpop.f32.mrb[0].mxu0
    %v2396 = vadd.f32 %v2235, %v2395
    %v2397 = vpop.f32.mrb[0].mxu0
    %v2398 = vpop.f32.mrb[0].mxu0
    %v2399 = vadd.f32 %v2238, %v2398
    %v2400 = vpop.f32.mrb[0].mxu0
    %2401 = vmatprep.mubr.bf16.mxu0 0
    %2402 = vmatmul.mubr.bf16.gmra.mrb[0].mxu0 %v1920
    %v2403 = vpop.f32.mrb[0].mxu0
    %v2404 = vadd.f32 %v2243, %v2403
    %v2405 = vpop.f32.mrb[0].mxu0
    %v2406 = vpop.f32.mrb[0].mxu0
    %v2407 = vadd.f32 %v2246, %v2406
    %v2408 = vpop.f32.mrb[0].mxu0
    %2409 = vmatprep.mubr.bf16.mxu0 0
    %2410 = vmatmul.mubr.bf16.gmra.mrb[0].mxu0 %v1923
    %v2411 = vpop.f32.mrb[0].mxu0
    %v2412 = vadd.f32 %v2251, %v2411
    %v2413 = vpop.f32.mrb[0].mxu0
    %v2414 = vpop.f32.mrb[0].mxu0
    %v2415 = vadd.f32 %v2254, %v2414
    %v2416 = vpop.f32.mrb[0].mxu0
    %2417 = vmatprep.mubr.bf16.mxu0 0
    %2418 = vmatmul.mubr.bf16.gmra.mrb[0].mxu0 %v1926
    %v2419 = vpop.f32.mrb[0].mxu0
    %v2420 = vadd.f32 %v2259, %v2419
    %v2421 = vpop.f32.mrb[0].mxu0
    %v2422 = vpop.f32.mrb[0].mxu0
    %v2423 = vadd.f32 %v2262, %v2422
    %v2424 = vpop.f32.mrb[0].mxu0
    %2425 = vmatprep.mubr.bf16.mxu0 0
    %2426 = vmatmul.mubr.bf16.gmra.mrb[0].mxu0 %v1929
    %v2427 = vpop.f32.mrb[0].mxu0
    %v2428 = vadd.f32 %v2267, %v2427
    %v2429 = vpop.f32.mrb[0].mxu0
    %v2430 = vpop.f32.mrb[0].mxu0
    %v2431 = vadd.f32 %v2270, %v2430
    %v2432 = vpop.f32.mrb[0].mxu0
    %2433 = vmatprep.mubr.bf16.mxu0 0
    %2434 = vmatmul.mubr.bf16.gmra.mrb[0].mxu0 %v1932
    %v2435 = vpop.f32.mrb[0].mxu0
    %v2436 = vadd.f32 %v2275, %v2435
    %v2437 = vpop.f32.mrb[0].mxu0
    %v2438 = vpop.f32.mrb[0].mxu0
    %v2439 = vadd.f32 %v2278, %v2438
    %v2440 = vpop.f32.mrb[0].mxu0
    %2441 = vmatprep.mubr.bf16.mxu0 0
    %2442 = vmatmul.mubr.bf16.gmra.mrb[0].mxu0 %v1935
    %v2443 = vpop.f32.mrb[0].mxu0
    %v2444 = vadd.f32 %v2283, %v2443
    %v2445 = vpop.f32.mrb[0].mxu0
    %v2446 = vpop.f32.mrb[0].mxu0
    %v2447 = vadd.f32 %v2286, %v2446
    %v2448 = vpop.f32.mrb[0].mxu0
    %2449 = vdwg.mxu0
    %v2450 = vadd.f32 %v1856, %v2324
    %v2451 = vadd.f32 %v1857, %v2327
    %v2452 = vadd.f32 %v1858, %v2332
    %v2453 = vadd.f32 %v1859, %v2335
    %v2454 = vadd.f32 %v1860, %v2340
    %v2455 = vadd.f32 %v1861, %v2343
    %v2456 = vadd.f32 %v1862, %v2348
    %v2457 = vadd.f32 %v1863, %v2351
    %v2458 = vadd.f32 %v1864, %v2356
    %v2459 = vadd.f32 %v1865, %v2359
    %v2460 = vadd.f32 %v1866, %v2364
    %v2461 = vadd.f32 %v1867, %v2367
    %v2462 = vadd.f32 %v1868, %v2372
    %v2463 = vadd.f32 %v1869, %v2375
    %v2464 = vadd.f32 %v1870, %v2380
    %v2465 = vadd.f32 %v1871, %v2383
    %v2466 = vadd.f32 %v1872, %v2388
    %v2467 = vadd.f32 %v1873, %v2391
    %v2468 = vadd.f32 %v1874, %v2396
    %v2469 = vadd.f32 %v1875, %v2399
    %v2470 = vadd.f32 %v1876, %v2404
    %v2471 = vadd.f32 %v1877, %v2407
    %v2472 = vadd.f32 %v1878, %v2412
    %v2473 = vadd.f32 %v1879, %v2415
    %v2474 = vadd.f32 %v1880, %v2420
    %v2475 = vadd.f32 %v1881, %v2423
    %v2476 = vadd.f32 %v1882, %v2428
    %v2477 = vadd.f32 %v1883, %v2431
    %v2478 = vadd.f32 %v1884, %v2436
    %v2479 = vadd.f32 %v1885, %v2439
    %v2480 = vadd.f32 %v1886, %v2444
    %v2481 = vadd.f32 %v1887, %v2447
    %2482 = vst [vmem:[#allocation2] sm:$0xff] %v2450
    %2483 = vst [vmem:[#allocation2 + $0x8] sm:$0xff] %v2451
    %2484 = vst [vmem:[#allocation2 + $0x10] sm:$0xff] %v2452
    %2485 = vst [vmem:[#allocation2 + $0x18] sm:$0xff] %v2453
    %2486 = vst [vmem:[#allocation2 + $0x20] sm:$0xff] %v2454
    %2487 = vst [vmem:[#allocation2 + $0x28] sm:$0xff] %v2455
    %2488 = vst [vmem:[#allocation2 + $0x30] sm:$0xff] %v2456
    %2489 = vst [vmem:[#allocation2 + $0x38] sm:$0xff] %v2457
    %2490 = vst [vmem:[#allocation2 + $0x40] sm:$0xff] %v2458
    %2491 = vst [vmem:[#allocation2 + $0x48] sm:$0xff] %v2459
    %2492 = vst [vmem:[#allocation2 + $0x50] sm:$0xff] %v2460
    %2493 = vst [vmem:[#allocation2 + $0x58] sm:$0xff] %v2461
    %2494 = vst [vmem:[#allocation2 + $0x60] sm:$0xff] %v2462
    %2495 = vst [vmem:[#allocation2 + $0x68] sm:$0xff] %v2463
    %2496 = vst [vmem:[#allocation2 + $0x70] sm:$0xff] %v2464
    %2497 = vst [vmem:[#allocation2 + $0x78] sm:$0xff] %v2465
    %2498 = vst [vmem:[#allocation2 + $0x80] sm:$0xff] %v2466
    %2499 = vst [vmem:[#allocation2 + $0x88] sm:$0xff] %v2467
    %2500 = vst [vmem:[#allocation2 + $0x90] sm:$0xff] %v2468
    %2501 = vst [vmem:[#allocation2 + $0x98] sm:$0xff] %v2469
    %2502 = vst [vmem:[#allocation2 + $0xa0] sm:$0xff] %v2470
    %2503 = vst [vmem:[#allocation2 + $0xa8] sm:$0xff] %v2471
    %2504 = vst [vmem:[#allocation2 + $0xb0] sm:$0xff] %v2472
    %2505 = vst [vmem:[#allocation2 + $0xb8] sm:$0xff] %v2473
    %2506 = vst [vmem:[#allocation2 + $0xc0] sm:$0xff] %v2474
    %2507 = vst [vmem:[#allocation2 + $0xc8] sm:$0xff] %v2475
    %2508 = vst [vmem:[#allocation2 + $0xd0] sm:$0xff] %v2476
    %2509 = vst [vmem:[#allocation2 + $0xd8] sm:$0xff] %v2477
    %2510 = vst [vmem:[#allocation2 + $0xe0] sm:$0xff] %v2478
    %2511 = vst [vmem:[#allocation2 + $0xe8] sm:$0xff] %v2479
    %2512 = vst [vmem:[#allocation2 + $0xf0] sm:$0xff] %v2480
    %2513 = vst [vmem:[#allocation2 + $0xf8] sm:$0xff] %v2481
    // Predicated region
    $region30: #{tpu_custom_call.1} parent=1 // pred_check
      %p2514 = pneg %p57
    $region31: #{tpu_custom_call.1} parent=1 // pred_check_branch
      %2516 = sbr.rel (%p2514) target = $region33
    $region32: #{tpu_custom_call.1} parent=1 // pred_region
      %v2517 = vld [vmem:[#allocation2] sm:$0xff]
      %v2518 = vld [vmem:[#allocation2 + $0x8] sm:$0xff]
      %v2519 = vld [vmem:[#allocation2 + $0x10] sm:$0xff]
      %v2520 = vld [vmem:[#allocation2 + $0x18] sm:$0xff]
      %v2521 = vld [vmem:[#allocation2 + $0x20] sm:$0xff]
      %v2522 = vld [vmem:[#allocation2 + $0x28] sm:$0xff]
      %v2523 = vld [vmem:[#allocation2 + $0x30] sm:$0xff]
      %v2524 = vld [vmem:[#allocation2 + $0x38] sm:$0xff]
      %v2525 = vld [vmem:[#allocation2 + $0x40] sm:$0xff]
      %v2526 = vld [vmem:[#allocation2 + $0x48] sm:$0xff]
      %v2527 = vld [vmem:[#allocation2 + $0x50] sm:$0xff]
      %v2528 = vld [vmem:[#allocation2 + $0x58] sm:$0xff]
      %v2529 = vld [vmem:[#allocation2 + $0x60] sm:$0xff]
      %v2530 = vld [vmem:[#allocation2 + $0x68] sm:$0xff]
      %v2531 = vld [vmem:[#allocation2 + $0x70] sm:$0xff]
      %v2532 = vld [vmem:[#allocation2 + $0x78] sm:$0xff]
      %v2533 = vld [vmem:[#allocation2 + $0x80] sm:$0xff]
      %v2534 = vld [vmem:[#allocation2 + $0x88] sm:$0xff]
      %v2535 = vld [vmem:[#allocation2 + $0x90] sm:$0xff]
      %v2536 = vld [vmem:[#allocation2 + $0x98] sm:$0xff]
      %v2537 = vld [vmem:[#allocation2 + $0xa0] sm:$0xff]
      %v2538 = vld [vmem:[#allocation2 + $0xa8] sm:$0xff]
      %v2539 = vld [vmem:[#allocation2 + $0xb0] sm:$0xff]
      %v2540 = vld [vmem:[#allocation2 + $0xb8] sm:$0xff]
      %v2541 = vld [vmem:[#allocation2 + $0xc0] sm:$0xff]
      %v2542 = vld [vmem:[#allocation2 + $0xc8] sm:$0xff]
      %v2543 = vld [vmem:[#allocation2 + $0xd0] sm:$0xff]
      %v2544 = vld [vmem:[#allocation2 + $0xd8] sm:$0xff]
      %v2545 = vld [vmem:[#allocation2 + $0xe0] sm:$0xff]
      %v2546 = vld [vmem:[#allocation2 + $0xe8] sm:$0xff]
      %v2547 = vld [vmem:[#allocation2 + $0xf0] sm:$0xff]
      %v2548 = vld [vmem:[#allocation2 + $0xf8] sm:$0xff]
      %2549 = vst [vmem:[#allocation9] sm:$0xff] %v2517
      %2550 = vst [vmem:[#allocation9 + $0x8] sm:$0xff] %v2518
      %2551 = vst [vmem:[#allocation9 + $0x10] sm:$0xff] %v2519
      %2552 = vst [vmem:[#allocation9 + $0x18] sm:$0xff] %v2520
      %2553 = vst [vmem:[#allocation9 + $0x20] sm:$0xff] %v2521
      %2554 = vst [vmem:[#allocation9 + $0x28] sm:$0xff] %v2522
      %2555 = vst [vmem:[#allocation9 + $0x30] sm:$0xff] %v2523
      %2556 = vst [vmem:[#allocation9 + $0x38] sm:$0xff] %v2524
      %2557 = vst [vmem:[#allocation9 + $0x40] sm:$0xff] %v2525
      %2558 = vst [vmem:[#allocation9 + $0x48] sm:$0xff] %v2526
      %2559 = vst [vmem:[#allocation9 + $0x50] sm:$0xff] %v2527
      %2560 = vst [vmem:[#allocation9 + $0x58] sm:$0xff] %v2528
      %2561 = vst [vmem:[#allocation9 + $0x60] sm:$0xff] %v2529
      %2562 = vst [vmem:[#allocation9 + $0x68] sm:$0xff] %v2530
      %2563 = vst [vmem:[#allocation9 + $0x70] sm:$0xff] %v2531
      %2564 = vst [vmem:[#allocation9 + $0x78] sm:$0xff] %v2532
      %2565 = vst [vmem:[#allocation9 + $0x80] sm:$0xff] %v2533
      %2566 = vst [vmem:[#allocation9 + $0x88] sm:$0xff] %v2534
      %2567 = vst [vmem:[#allocation9 + $0x90] sm:$0xff] %v2535
      %2568 = vst [vmem:[#allocation9 + $0x98] sm:$0xff] %v2536
      %2569 = vst [vmem:[#allocation9 + $0xa0] sm:$0xff] %v2537
      %2570 = vst [vmem:[#allocation9 + $0xa8] sm:$0xff] %v2538
      %2571 = vst [vmem:[#allocation9 + $0xb0] sm:$0xff] %v2539
      %2572 = vst [vmem:[#allocation9 + $0xb8] sm:$0xff] %v2540
      %2573 = vst [vmem:[#allocation9 + $0xc0] sm:$0xff] %v2541
      %2574 = vst [vmem:[#allocation9 + $0xc8] sm:$0xff] %v2542
      %2575 = vst [vmem:[#allocation9 + $0xd0] sm:$0xff] %v2543
      %2576 = vst [vmem:[#allocation9 + $0xd8] sm:$0xff] %v2544
      %2577 = vst [vmem:[#allocation9 + $0xe0] sm:$0xff] %v2545
      %2578 = vst [vmem:[#allocation9 + $0xe8] sm:$0xff] %v2546
      %2579 = vst [vmem:[#allocation9 + $0xf0] sm:$0xff] %v2547
      %2580 = vst [vmem:[#allocation9 + $0xf8] sm:$0xff] %v2548
    $region33: #{tpu_custom_call.1} parent=1 // pred_fallthru
      _
    // Predicated region
    $region34: #{tpu_custom_call.1} parent=1 // pred_check
      _
    $region35: #{tpu_custom_call.1} parent=1 // pred_check_branch
      %2582 = sbr.rel (0) target = $region37
    $region36: #{tpu_custom_call.1} parent=1 // pred_region
      %s2584 = ssub.s32 4096, 4096
      %2585 = vsyncadd [#allocation5], %s2584
      %s2586 = sshll.u32 [#allocation9], 4
      %s2587 = int_to_ptr.vmem [resolvable:$true] %s2586
      %2592 = dma.vmem_to_hbm [thread:$0]  %s2587, 4096, %s3, [#allocation5], 128, 128, 8
    $region37: #{tpu_custom_call.1} parent=1 // pred_fallthru
      _
    // Predicated region
    $region38: #{tpu_custom_call.1} parent=1 // pred_check
      _
    $region39: #{tpu_custom_call.1} parent=1 // pred_check_branch
      %2594 = sbr.rel (0) target = $region41
    $region40: #{tpu_custom_call.1} parent=1 // pred_region
      %2595 = dma.done [#allocation5], 4096
    $region41: #{tpu_custom_call.1} parent=1 // pred_fallthru
      _
    %2596 = vsyncpa [#allocation4], 1
    %2597 = vsyncpa [#allocation7], 1
    %2598 = vsyncpa [#allocation5], 1

</llo_original>
